<compile_context>
chip_gen: v7x
topology: tpu7x:2x2x1
jax: 0.10.0
libtpu: 0.0.40
codegen_flags: <defaults>
</compile_context>

<pallas_src>
import functools

import jax
import jax.numpy as jnp
from jax import lax
from jax.experimental import pallas as pl
from jax.experimental.pallas import tpu as pltpu


# ----------------------------------------------------------------------------
# Fused Pallas kernel: whole DsBlock forward for one image per grid step.
# ----------------------------------------------------------------------------
def _make_kernel(C, H, W, d):
    HW = H * W
    # Flat lane offset of tap (i, j): dy*W + dx with dy, dx in {-d, 0, +d}.
    offs = tuple((i - 1) * d * W + (j - 1) * d
                 for i in range(3) for j in range(3))

    def rot(x, off):
        # output[:, p] = x[:, (p + off) % HW]  (static rotation along lanes).
        # TODO(synk): pltpu.roll could issue this directly on the XLU; concat
        #             of two lane slices is used here for unambiguous semantics.
        off = off % HW
        if off == 0:
            return x
        return jnp.concatenate([x[:, off:], x[:, :off]], axis=-1)

    def kernel(x_ref, mask_ref, dw1_ref, pw1_ref, b1_ref,
               dw2_ref, pw2_ref, b2_ref, o_ref):

        def half(src, dw_ref, pw_ref, b_ref):
            # Dilated 3x3 depthwise conv: 9 lane rotations + masked FMA.
            # Everything is lane-dense f32 VPU work (v5e-safe).
            acc = jnp.zeros((C, HW), jnp.float32)
            for k in range(9):                      # tiny fixed unroll
                tap = rot(src, offs[k])
                if offs[k] != 0:
                    tap = tap * mask_ref[k]         # (1, HW) boundary mask
                acc = acc + tap * dw_ref[k]         # (C, 1) folded dw*BN tap
            # Pointwise 1x1 conv over the whole image: one MXU matmul per half,
            # bf16 operands, f32 accumulation.  BN scales are pre-folded into
            # pw/dw; the BN biases collapse into the single bias added here.
            y = jnp.dot(pw_ref[...], acc.astype(jnp.bfloat16),
                        preferred_element_type=jnp.float32)
            return y + b_ref[...]                   # (C, 1) folded bias

        a = jnp.maximum(half(x_ref[...], dw1_ref, pw1_ref, b1_ref), 0.0)
        y = half(a, dw2_ref, pw2_ref, b2_ref)
        # Residual add + final ReLU; x_ref is re-read so its first load does
        # not need to stay live across both halves.
        o_ref[...] = jnp.maximum(y + x_ref[...], 0.0).astype(o_ref.dtype)

    return kernel


def ds_block_pallas_flat(x_flat, kp, C, H, W, dilation):
    """Fused DsBlock forward on flattened-NCHW (N, C, H*W) float32 input."""
    N = x_flat.shape[0]
    HW = H * W

    # Grid over batch only; weights/masks use constant index maps so they are
    # DMA'd once and stay VMEM-resident.  "parallel" + N >= 2 feeds both v7x
    # TensorCores (for N == 1 add a spatial grid axis instead).
    # VMEM: ~4*C*HW*4B of double-buffered image blocks + a few KiB of weights,
    # far below every generation's limit at these shapes.
    # TODO(synk): for very large C*H*W, split H across a second grid axis.
    return pl.pallas_call(
        _make_kernel(C, H, W, dilation),
        out_shape=jax.ShapeDtypeStruct((N, C, HW), jnp.float32),
        grid=(N,),
        in_specs=[
            pl.BlockSpec((None, C, HW), lambda n: (n, 0, 0)),   # x image
            pl.BlockSpec((9, 1, HW), lambda n: (0, 0, 0)),      # boundary masks
            pl.BlockSpec((9, C, 1), lambda n: (0, 0, 0)),       # dw1 * bn1.scale
            pl.BlockSpec((C, C), lambda n: (0, 0)),             # bn2.scale*pw1 (bf16)
            pl.BlockSpec((C, 1), lambda n: (0, 0)),             # folded bias 1
            pl.BlockSpec((9, C, 1), lambda n: (0, 0, 0)),       # dw2 * bn3.scale
            pl.BlockSpec((C, C), lambda n: (0, 0)),             # bn4.scale*pw2 (bf16)
            pl.BlockSpec((C, 1), lambda n: (0, 0)),             # folded bias 2
        ],
        out_specs=pl.BlockSpec((None, C, HW), lambda n: (n, 0, 0)),
        compiler_params=pltpu.CompilerParams(
            dimension_semantics=("parallel",)),
    )(x_flat, kp["masks"], kp["dw1"], kp["pw1"], kp["b1"],
      kp["dw2"], kp["pw2"], kp["b2"])


# ----------------------------------------------------------------------------
# Parameter construction (deterministic, torch layout) + BN folding
# ----------------------------------------------------------------------------
def _fold_bn(gamma, beta, mean, var, eps=1e-3):
    scale = gamma / jnp.sqrt(var + eps)
    bias = beta - mean * scale
    return scale, bias


def make_params(key, C):
    """Build torch-layout parameters deterministically."""
    ks = jax.random.split(key, 8)
    p = {}
    p["dw1"] = jax.random.normal(ks[0], (C, 1, 3, 3), jnp.float32) * 0.2
    p["pw1"] = jax.random.normal(ks[1], (C, C, 1, 1), jnp.float32) * 0.2
    p["dw2"] = jax.random.normal(ks[2], (C, 1, 3, 3), jnp.float32) * 0.2
    p["pw2"] = jax.random.normal(ks[3], (C, C, 1, 1), jnp.float32) * 0.2
    for i, kk in zip(range(1, 5), ks[4:8]):
        sub = jax.random.split(kk, 4)
        p[f"bn{i}"] = dict(
            gamma=1.0 + 0.1 * jax.random.normal(sub[0], (C,), jnp.float32),
            beta=0.1 * jax.random.normal(sub[1], (C,), jnp.float32),
            mean=0.1 * jax.random.normal(sub[2], (C,), jnp.float32),
            var=jax.random.uniform(sub[3], (C,), jnp.float32, 0.5, 1.5),
        )
    return p


def _prep_kernel_params(p, C, H, W, d):
    """Fold all four BatchNorms into the conv weights / one bias per half and
    lay everything out for the (C, H*W) kernel layout."""
    s1, b1 = _fold_bn(**p["bn1"])
    s2, b2 = _fold_bn(**p["bn2"])
    s3, b3 = _fold_bn(**p["bn3"])
    s4, b4 = _fold_bn(**p["bn4"])

    def dw_fold(w, s):          # (C,1,3,3) -> (9, C, 1); BN scale folded (exact f32)
        wf = w[:, 0].reshape(C, 9) * s[:, None]
        return jnp.transpose(wf, (1, 0))[:, :, None]

    def pw_fold(w, s):          # (Cout,Cin,1,1) -> (Cout,Cin)*s[out], bf16 for MXU
        return (w[:, :, 0, 0] * s[:, None]).astype(jnp.bfloat16)

    def bias_fold(w, b_in, s_out, b_out):   # ((pw @ b_in) * s_out + b_out) as (C,1)
        return (s_out * (w[:, :, 0, 0] @ b_in) + b_out)[:, None]

    # 0/1 boundary masks for the 9 dilated taps (kill lane-rotation wrap-around).
    hh = jnp.arange(H)[:, None]
    ww = jnp.arange(W)[None, :]
    rows = []
    for i in range(3):
        for j in range(3):
            dy, dx = (i - 1) * d, (j - 1) * d
            m = ((hh + dy >= 0) & (hh + dy < H) &
                 (ww + dx >= 0) & (ww + dx < W))
            rows.append(m.astype(jnp.float32).reshape(H * W))
    masks = jnp.stack(rows)[:, None, :]              # (9, 1, H*W)

    return dict(
        dw1=dw_fold(p["dw1"], s1), pw1=pw_fold(p["pw1"], s2),
        b1=bias_fold(p["pw1"], b1, s2, b2),
        dw2=dw_fold(p["dw2"], s3), pw2=pw_fold(p["pw2"], s4),
        b2=bias_fold(p["pw2"], b3, s4, b4),
        masks=masks,
    )


@functools.partial(jax.jit, static_argnames=("dilation",))
def ds_block_pallas(x_nchw, params, dilation=1):
    """DsBlock forward (drop_prob=0, eval-mode BN).  Input/output NCHW.

    The kernel consumes the flattened NCHW layout directly, so the wrapper is
    reshape-only (no HBM transpose passes).
    """
    N, C, H, W = x_nchw.shape
    d = int(dilation)
    kp = _prep_kernel_params(params, C, H, W, d)
    x = x_nchw.astype(jnp.float32).reshape(N, C, H * W)   # free view, no transpose
    y = ds_block_pallas_flat(x, kp, C, H, W, d)
    # TODO(synk): Dropout2d is skipped because drop_prob=0 in this forward path.
    return y.reshape(N, C, H, W)


# ----------------------------------------------------------------------------
# Pure-JAX reference (mirrors the PyTorch forward, eval-mode BN)
# ----------------------------------------------------------------------------
def ds_block_ref(x, p, dilation=1):
    C = x.shape[1]
    d = dilation

    def dwconv(h, w):
        return lax.conv_general_dilated(
            h, w, (1, 1), ((d, d), (d, d)), rhs_dilation=(d, d),
            dimension_numbers=("NCHW", "OIHW", "NCHW"), feature_group_count=C)

    def pwconv(h, w):
        return lax.conv_general_dilated(
            h, w, (1, 1), "VALID",
            dimension_numbers=("NCHW", "OIHW", "NCHW"))

    def bn(h, b):
        s, bb = _fold_bn(**b)
        return h * s[None, :, None, None] + bb[None, :, None, None]

    y = bn(dwconv(x, p["dw1"]), p["bn1"])
    y = bn(pwconv(y, p["pw1"]), p["bn2"])
    y = jnp.maximum(y, 0.0)
    y = bn(dwconv(y, p["dw2"]), p["bn3"])
    y = bn(pwconv(y, p["pw2"]), p["bn4"])
    return jnp.maximum(y + x, 0.0)


# ----------------------------------------------------------------------------
if __name__ == "__main__":
    N, C, H, W = 2, 32, 16, 16
    dilation = 1

    key = jax.random.PRNGKey(0)
    k_x, k_p = jax.random.split(key)
    x = jax.random.normal(k_x, (N, C, H, W), jnp.float32)
    params = make_params(k_p, C)

    out = jax.block_until_ready(ds_block_pallas(x, params, dilation=dilation))
    ref = jax.block_until_ready(ds_block_ref(x, params, dilation=dilation))

    # bf16 MXU operands (f32 accumulate) -> tolerance loosened vs f32 reference.
    if not bool(jnp.allclose(out, ref, atol=5e-2, rtol=5e-2)):
        raise AssertionError(
            f"mismatch: max abs err = {float(jnp.max(jnp.abs(out - ref)))}")

    print("KERNEL_OK")
</pallas_src>

<mosaic_0001>
module attributes {stable_mosaic.version = 11 : i64} {
  func.func @kernel(%arg0: i32, %arg1: memref<1x32x256xf32, #tpu.memory_space<vmem>>, %arg2: memref<9x1x256xf32, #tpu.memory_space<vmem>>, %arg3: memref<9x32x1xf32, #tpu.memory_space<vmem>>, %arg4: memref<32x32xbf16, #tpu.memory_space<vmem>>, %arg5: memref<32x1xf32, #tpu.memory_space<vmem>>, %arg6: memref<9x32x1xf32, #tpu.memory_space<vmem>>, %arg7: memref<32x32xbf16, #tpu.memory_space<vmem>>, %arg8: memref<32x1xf32, #tpu.memory_space<vmem>>, %arg9: memref<1x32x256xf32, #tpu.memory_space<vmem>>) attributes {dimension_semantics = [#tpu.dimension_semantics<parallel>], iteration_bounds = array<i64: 2>, scalar_prefetch = 0 : i64, scratch_operands = 0 : i64, tpu.core_type = #tpu.core_type<tc>, window_params = [{transform_indices = @transform_0, window_bounds = array<i64: 1, 32, 256>}, {pipeline_mode = #tpu.pipeline_mode<synchronous>, transform_indices = @transform_1, window_bounds = array<i64: 9, 1, 256>}, {pipeline_mode = #tpu.pipeline_mode<synchronous>, transform_indices = @transform_2, window_bounds = array<i64: 9, 32, 1>}, {pipeline_mode = #tpu.pipeline_mode<synchronous>, transform_indices = @transform_3, window_bounds = array<i64: 32, 32>}, {pipeline_mode = #tpu.pipeline_mode<synchronous>, transform_indices = @transform_4, window_bounds = array<i64: 32, 1>}, {pipeline_mode = #tpu.pipeline_mode<synchronous>, transform_indices = @transform_5, window_bounds = array<i64: 9, 32, 1>}, {pipeline_mode = #tpu.pipeline_mode<synchronous>, transform_indices = @transform_6, window_bounds = array<i64: 32, 32>}, {pipeline_mode = #tpu.pipeline_mode<synchronous>, transform_indices = @transform_7, window_bounds = array<i64: 32, 1>}, {transform_indices = @transform_8, window_bounds = array<i64: 1, 32, 256>}]} {
    %c0 = arith.constant 0 : index
    %c0_0 = arith.constant 0 : index
    %c0_1 = arith.constant 0 : index
    %0 = vector.load %arg1[%c0, %c0_0, %c0_1] : memref<1x32x256xf32, #tpu.memory_space<vmem>>, vector<1x32x256xf32>
    %1 = vector.shape_cast %0 : vector<1x32x256xf32> to vector<32x256xf32>
    %cst = arith.constant 0.000000e+00 : f32
    %2 = vector.broadcast %cst : f32 to vector<32x256xf32>
    %3 = vector.extract_strided_slice %1 {offsets = [0, 239], sizes = [32, 17], strides = [1, 1]} : vector<32x256xf32> to vector<32x17xf32>
    %4 = vector.extract_strided_slice %1 {offsets = [0, 0], sizes = [32, 239], strides = [1, 1]} : vector<32x256xf32> to vector<32x239xf32>
    %5 = tpu.concatenate %3, %4 in 1 : vector<32x17xf32>, vector<32x239xf32> -> vector<32x256xf32>
    %c0_2 = arith.constant 0 : index
    %c0_3 = arith.constant 0 : index
    %c0_4 = arith.constant 0 : index
    %6 = vector.load %arg2[%c0_2, %c0_3, %c0_4] : memref<9x1x256xf32, #tpu.memory_space<vmem>>, vector<1x1x256xf32>
    %7 = vector.shape_cast %6 : vector<1x1x256xf32> to vector<1x256xf32>
    %8 = vector.broadcast %7 : vector<1x256xf32> to vector<32x256xf32>
    %9 = arith.mulf %5, %8 : vector<32x256xf32>
    %c0_5 = arith.constant 0 : index
    %c0_6 = arith.constant 0 : index
    %c0_7 = arith.constant 0 : index
    %10 = vector.load %arg3[%c0_5, %c0_6, %c0_7] : memref<9x32x1xf32, #tpu.memory_space<vmem>>, vector<1x32x1xf32>
    %11 = vector.shape_cast %10 : vector<1x32x1xf32> to vector<32x1xf32>
    %12 = vector.broadcast %11 : vector<32x1xf32> to vector<32x256xf32>
    %13 = arith.mulf %9, %12 : vector<32x256xf32>
    %14 = arith.addf %2, %13 : vector<32x256xf32>
    %15 = vector.extract_strided_slice %1 {offsets = [0, 240], sizes = [32, 16], strides = [1, 1]} : vector<32x256xf32> to vector<32x16xf32>
    %16 = vector.extract_strided_slice %1 {offsets = [0, 0], sizes = [32, 240], strides = [1, 1]} : vector<32x256xf32> to vector<32x240xf32>
    %17 = tpu.concatenate %15, %16 in 1 : vector<32x16xf32>, vector<32x240xf32> -> vector<32x256xf32>
    %c1 = arith.constant 1 : index
    %c0_8 = arith.constant 0 : index
    %c0_9 = arith.constant 0 : index
    %18 = vector.load %arg2[%c1, %c0_8, %c0_9] : memref<9x1x256xf32, #tpu.memory_space<vmem>>, vector<1x1x256xf32>
    %19 = vector.shape_cast %18 : vector<1x1x256xf32> to vector<1x256xf32>
    %20 = vector.broadcast %19 : vector<1x256xf32> to vector<32x256xf32>
    %21 = arith.mulf %17, %20 : vector<32x256xf32>
    %c1_10 = arith.constant 1 : index
    %c0_11 = arith.constant 0 : index
    %c0_12 = arith.constant 0 : index
    %22 = vector.load %arg3[%c1_10, %c0_11, %c0_12] : memref<9x32x1xf32, #tpu.memory_space<vmem>>, vector<1x32x1xf32>
    %23 = vector.shape_cast %22 : vector<1x32x1xf32> to vector<32x1xf32>
    %24 = vector.broadcast %23 : vector<32x1xf32> to vector<32x256xf32>
    %25 = arith.mulf %21, %24 : vector<32x256xf32>
    %26 = arith.addf %14, %25 : vector<32x256xf32>
    %27 = vector.extract_strided_slice %1 {offsets = [0, 241], sizes = [32, 15], strides = [1, 1]} : vector<32x256xf32> to vector<32x15xf32>
    %28 = vector.extract_strided_slice %1 {offsets = [0, 0], sizes = [32, 241], strides = [1, 1]} : vector<32x256xf32> to vector<32x241xf32>
    %29 = tpu.concatenate %27, %28 in 1 : vector<32x15xf32>, vector<32x241xf32> -> vector<32x256xf32>
    %c2 = arith.constant 2 : index
    %c0_13 = arith.constant 0 : index
    %c0_14 = arith.constant 0 : index
    %30 = vector.load %arg2[%c2, %c0_13, %c0_14] : memref<9x1x256xf32, #tpu.memory_space<vmem>>, vector<1x1x256xf32>
    %31 = vector.shape_cast %30 : vector<1x1x256xf32> to vector<1x256xf32>
    %32 = vector.broadcast %31 : vector<1x256xf32> to vector<32x256xf32>
    %33 = arith.mulf %29, %32 : vector<32x256xf32>
    %c2_15 = arith.constant 2 : index
    %c0_16 = arith.constant 0 : index
    %c0_17 = arith.constant 0 : index
    %34 = vector.load %arg3[%c2_15, %c0_16, %c0_17] : memref<9x32x1xf32, #tpu.memory_space<vmem>>, vector<1x32x1xf32>
    %35 = vector.shape_cast %34 : vector<1x32x1xf32> to vector<32x1xf32>
    %36 = vector.broadcast %35 : vector<32x1xf32> to vector<32x256xf32>
    %37 = arith.mulf %33, %36 : vector<32x256xf32>
    %38 = arith.addf %26, %37 : vector<32x256xf32>
    %39 = vector.extract_strided_slice %1 {offsets = [0, 255], sizes = [32, 1], strides = [1, 1]} : vector<32x256xf32> to vector<32x1xf32>
    %40 = vector.extract_strided_slice %1 {offsets = [0, 0], sizes = [32, 255], strides = [1, 1]} : vector<32x256xf32> to vector<32x255xf32>
    %41 = tpu.concatenate %39, %40 in 1 : vector<32x1xf32>, vector<32x255xf32> -> vector<32x256xf32>
    %c3 = arith.constant 3 : index
    %c0_18 = arith.constant 0 : index
    %c0_19 = arith.constant 0 : index
    %42 = vector.load %arg2[%c3, %c0_18, %c0_19] : memref<9x1x256xf32, #tpu.memory_space<vmem>>, vector<1x1x256xf32>
    %43 = vector.shape_cast %42 : vector<1x1x256xf32> to vector<1x256xf32>
    %44 = vector.broadcast %43 : vector<1x256xf32> to vector<32x256xf32>
    %45 = arith.mulf %41, %44 : vector<32x256xf32>
    %c3_20 = arith.constant 3 : index
    %c0_21 = arith.constant 0 : index
    %c0_22 = arith.constant 0 : index
    %46 = vector.load %arg3[%c3_20, %c0_21, %c0_22] : memref<9x32x1xf32, #tpu.memory_space<vmem>>, vector<1x32x1xf32>
    %47 = vector.shape_cast %46 : vector<1x32x1xf32> to vector<32x1xf32>
    %48 = vector.broadcast %47 : vector<32x1xf32> to vector<32x256xf32>
    %49 = arith.mulf %45, %48 : vector<32x256xf32>
    %50 = arith.addf %38, %49 : vector<32x256xf32>
    %c4 = arith.constant 4 : index
    %c0_23 = arith.constant 0 : index
    %c0_24 = arith.constant 0 : index
    %51 = vector.load %arg3[%c4, %c0_23, %c0_24] : memref<9x32x1xf32, #tpu.memory_space<vmem>>, vector<1x32x1xf32>
    %52 = vector.shape_cast %51 : vector<1x32x1xf32> to vector<32x1xf32>
    %53 = vector.broadcast %52 : vector<32x1xf32> to vector<32x256xf32>
    %54 = arith.mulf %1, %53 : vector<32x256xf32>
    %55 = arith.addf %50, %54 : vector<32x256xf32>
    %56 = vector.extract_strided_slice %1 {offsets = [0, 1], sizes = [32, 255], strides = [1, 1]} : vector<32x256xf32> to vector<32x255xf32>
    %57 = vector.extract_strided_slice %1 {offsets = [0, 0], sizes = [32, 1], strides = [1, 1]} : vector<32x256xf32> to vector<32x1xf32>
    %58 = tpu.concatenate %56, %57 in 1 : vector<32x255xf32>, vector<32x1xf32> -> vector<32x256xf32>
    %c5 = arith.constant 5 : index
    %c0_25 = arith.constant 0 : index
    %c0_26 = arith.constant 0 : index
    %59 = vector.load %arg2[%c5, %c0_25, %c0_26] : memref<9x1x256xf32, #tpu.memory_space<vmem>>, vector<1x1x256xf32>
    %60 = vector.shape_cast %59 : vector<1x1x256xf32> to vector<1x256xf32>
    %61 = vector.broadcast %60 : vector<1x256xf32> to vector<32x256xf32>
    %62 = arith.mulf %58, %61 : vector<32x256xf32>
    %c5_27 = arith.constant 5 : index
    %c0_28 = arith.constant 0 : index
    %c0_29 = arith.constant 0 : index
    %63 = vector.load %arg3[%c5_27, %c0_28, %c0_29] : memref<9x32x1xf32, #tpu.memory_space<vmem>>, vector<1x32x1xf32>
    %64 = vector.shape_cast %63 : vector<1x32x1xf32> to vector<32x1xf32>
    %65 = vector.broadcast %64 : vector<32x1xf32> to vector<32x256xf32>
    %66 = arith.mulf %62, %65 : vector<32x256xf32>
    %67 = arith.addf %55, %66 : vector<32x256xf32>
    %68 = vector.extract_strided_slice %1 {offsets = [0, 15], sizes = [32, 241], strides = [1, 1]} : vector<32x256xf32> to vector<32x241xf32>
    %69 = vector.extract_strided_slice %1 {offsets = [0, 0], sizes = [32, 15], strides = [1, 1]} : vector<32x256xf32> to vector<32x15xf32>
    %70 = tpu.concatenate %68, %69 in 1 : vector<32x241xf32>, vector<32x15xf32> -> vector<32x256xf32>
    %c6 = arith.constant 6 : index
    %c0_30 = arith.constant 0 : index
    %c0_31 = arith.constant 0 : index
    %71 = vector.load %arg2[%c6, %c0_30, %c0_31] : memref<9x1x256xf32, #tpu.memory_space<vmem>>, vector<1x1x256xf32>
    %72 = vector.shape_cast %71 : vector<1x1x256xf32> to vector<1x256xf32>
    %73 = vector.broadcast %72 : vector<1x256xf32> to vector<32x256xf32>
    %74 = arith.mulf %70, %73 : vector<32x256xf32>
    %c6_32 = arith.constant 6 : index
    %c0_33 = arith.constant 0 : index
    %c0_34 = arith.constant 0 : index
    %75 = vector.load %arg3[%c6_32, %c0_33, %c0_34] : memref<9x32x1xf32, #tpu.memory_space<vmem>>, vector<1x32x1xf32>
    %76 = vector.shape_cast %75 : vector<1x32x1xf32> to vector<32x1xf32>
    %77 = vector.broadcast %76 : vector<32x1xf32> to vector<32x256xf32>
    %78 = arith.mulf %74, %77 : vector<32x256xf32>
    %79 = arith.addf %67, %78 : vector<32x256xf32>
    %80 = vector.extract_strided_slice %1 {offsets = [0, 16], sizes = [32, 240], strides = [1, 1]} : vector<32x256xf32> to vector<32x240xf32>
    %81 = vector.extract_strided_slice %1 {offsets = [0, 0], sizes = [32, 16], strides = [1, 1]} : vector<32x256xf32> to vector<32x16xf32>
    %82 = tpu.concatenate %80, %81 in 1 : vector<32x240xf32>, vector<32x16xf32> -> vector<32x256xf32>
    %c7 = arith.constant 7 : index
    %c0_35 = arith.constant 0 : index
    %c0_36 = arith.constant 0 : index
    %83 = vector.load %arg2[%c7, %c0_35, %c0_36] : memref<9x1x256xf32, #tpu.memory_space<vmem>>, vector<1x1x256xf32>
    %84 = vector.shape_cast %83 : vector<1x1x256xf32> to vector<1x256xf32>
    %85 = vector.broadcast %84 : vector<1x256xf32> to vector<32x256xf32>
    %86 = arith.mulf %82, %85 : vector<32x256xf32>
    %c7_37 = arith.constant 7 : index
    %c0_38 = arith.constant 0 : index
    %c0_39 = arith.constant 0 : index
    %87 = vector.load %arg3[%c7_37, %c0_38, %c0_39] : memref<9x32x1xf32, #tpu.memory_space<vmem>>, vector<1x32x1xf32>
    %88 = vector.shape_cast %87 : vector<1x32x1xf32> to vector<32x1xf32>
    %89 = vector.broadcast %88 : vector<32x1xf32> to vector<32x256xf32>
    %90 = arith.mulf %86, %89 : vector<32x256xf32>
    %91 = arith.addf %79, %90 : vector<32x256xf32>
    %92 = vector.extract_strided_slice %1 {offsets = [0, 17], sizes = [32, 239], strides = [1, 1]} : vector<32x256xf32> to vector<32x239xf32>
    %93 = vector.extract_strided_slice %1 {offsets = [0, 0], sizes = [32, 17], strides = [1, 1]} : vector<32x256xf32> to vector<32x17xf32>
    %94 = tpu.concatenate %92, %93 in 1 : vector<32x239xf32>, vector<32x17xf32> -> vector<32x256xf32>
    %c8 = arith.constant 8 : index
    %c0_40 = arith.constant 0 : index
    %c0_41 = arith.constant 0 : index
    %95 = vector.load %arg2[%c8, %c0_40, %c0_41] : memref<9x1x256xf32, #tpu.memory_space<vmem>>, vector<1x1x256xf32>
    %96 = vector.shape_cast %95 : vector<1x1x256xf32> to vector<1x256xf32>
    %97 = vector.broadcast %96 : vector<1x256xf32> to vector<32x256xf32>
    %98 = arith.mulf %94, %97 : vector<32x256xf32>
    %c8_42 = arith.constant 8 : index
    %c0_43 = arith.constant 0 : index
    %c0_44 = arith.constant 0 : index
    %99 = vector.load %arg3[%c8_42, %c0_43, %c0_44] : memref<9x32x1xf32, #tpu.memory_space<vmem>>, vector<1x32x1xf32>
    %100 = vector.shape_cast %99 : vector<1x32x1xf32> to vector<32x1xf32>
    %101 = vector.broadcast %100 : vector<32x1xf32> to vector<32x256xf32>
    %102 = arith.mulf %98, %101 : vector<32x256xf32>
    %103 = arith.addf %91, %102 : vector<32x256xf32>
    %c0_45 = arith.constant 0 : index
    %c0_46 = arith.constant 0 : index
    %104 = vector.load %arg4[%c0_45, %c0_46] : memref<32x32xbf16, #tpu.memory_space<vmem>>, vector<32x32xbf16>
    %105 = arith.truncf %103 : vector<32x256xf32> to vector<32x256xbf16>
    %cst_47 = arith.constant dense<0.000000e+00> : vector<32x256xf32>
    %106 = tpu.matmul %104, %105, %cst_47 {dimension_numbers = #tpu.dot_dimension_numbers<[1], [0], [0], [1], [0, 0, 1, 1], [], []>} : vector<32x32xbf16>, vector<32x256xbf16>, vector<32x256xf32> -> vector<32x256xf32>
    %c0_48 = arith.constant 0 : index
    %c0_49 = arith.constant 0 : index
    %107 = vector.load %arg5[%c0_48, %c0_49] : memref<32x1xf32, #tpu.memory_space<vmem>>, vector<32x1xf32>
    %108 = vector.broadcast %107 : vector<32x1xf32> to vector<32x256xf32>
    %109 = arith.addf %106, %108 : vector<32x256xf32>
    %cst_50 = arith.constant 0.000000e+00 : f32
    %110 = vector.broadcast %cst_50 : f32 to vector<32x256xf32>
    %111 = arith.maximumf %109, %110 : vector<32x256xf32>
    %cst_51 = arith.constant 0.000000e+00 : f32
    %112 = vector.broadcast %cst_51 : f32 to vector<32x256xf32>
    %113 = vector.extract_strided_slice %111 {offsets = [0, 239], sizes = [32, 17], strides = [1, 1]} : vector<32x256xf32> to vector<32x17xf32>
    %114 = vector.extract_strided_slice %111 {offsets = [0, 0], sizes = [32, 239], strides = [1, 1]} : vector<32x256xf32> to vector<32x239xf32>
    %115 = tpu.concatenate %113, %114 in 1 : vector<32x17xf32>, vector<32x239xf32> -> vector<32x256xf32>
    %c0_52 = arith.constant 0 : index
    %c0_53 = arith.constant 0 : index
    %c0_54 = arith.constant 0 : index
    %116 = vector.load %arg2[%c0_52, %c0_53, %c0_54] : memref<9x1x256xf32, #tpu.memory_space<vmem>>, vector<1x1x256xf32>
    %117 = vector.shape_cast %116 : vector<1x1x256xf32> to vector<1x256xf32>
    %118 = vector.broadcast %117 : vector<1x256xf32> to vector<32x256xf32>
    %119 = arith.mulf %115, %118 : vector<32x256xf32>
    %c0_55 = arith.constant 0 : index
    %c0_56 = arith.constant 0 : index
    %c0_57 = arith.constant 0 : index
    %120 = vector.load %arg6[%c0_55, %c0_56, %c0_57] : memref<9x32x1xf32, #tpu.memory_space<vmem>>, vector<1x32x1xf32>
    %121 = vector.shape_cast %120 : vector<1x32x1xf32> to vector<32x1xf32>
    %122 = vector.broadcast %121 : vector<32x1xf32> to vector<32x256xf32>
    %123 = arith.mulf %119, %122 : vector<32x256xf32>
    %124 = arith.addf %112, %123 : vector<32x256xf32>
    %125 = vector.extract_strided_slice %111 {offsets = [0, 240], sizes = [32, 16], strides = [1, 1]} : vector<32x256xf32> to vector<32x16xf32>
    %126 = vector.extract_strided_slice %111 {offsets = [0, 0], sizes = [32, 240], strides = [1, 1]} : vector<32x256xf32> to vector<32x240xf32>
    %127 = tpu.concatenate %125, %126 in 1 : vector<32x16xf32>, vector<32x240xf32> -> vector<32x256xf32>
    %c1_58 = arith.constant 1 : index
    %c0_59 = arith.constant 0 : index
    %c0_60 = arith.constant 0 : index
    %128 = vector.load %arg2[%c1_58, %c0_59, %c0_60] : memref<9x1x256xf32, #tpu.memory_space<vmem>>, vector<1x1x256xf32>
    %129 = vector.shape_cast %128 : vector<1x1x256xf32> to vector<1x256xf32>
    %130 = vector.broadcast %129 : vector<1x256xf32> to vector<32x256xf32>
    %131 = arith.mulf %127, %130 : vector<32x256xf32>
    %c1_61 = arith.constant 1 : index
    %c0_62 = arith.constant 0 : index
    %c0_63 = arith.constant 0 : index
    %132 = vector.load %arg6[%c1_61, %c0_62, %c0_63] : memref<9x32x1xf32, #tpu.memory_space<vmem>>, vector<1x32x1xf32>
    %133 = vector.shape_cast %132 : vector<1x32x1xf32> to vector<32x1xf32>
    %134 = vector.broadcast %133 : vector<32x1xf32> to vector<32x256xf32>
    %135 = arith.mulf %131, %134 : vector<32x256xf32>
    %136 = arith.addf %124, %135 : vector<32x256xf32>
    %137 = vector.extract_strided_slice %111 {offsets = [0, 241], sizes = [32, 15], strides = [1, 1]} : vector<32x256xf32> to vector<32x15xf32>
    %138 = vector.extract_strided_slice %111 {offsets = [0, 0], sizes = [32, 241], strides = [1, 1]} : vector<32x256xf32> to vector<32x241xf32>
    %139 = tpu.concatenate %137, %138 in 1 : vector<32x15xf32>, vector<32x241xf32> -> vector<32x256xf32>
    %c2_64 = arith.constant 2 : index
    %c0_65 = arith.constant 0 : index
    %c0_66 = arith.constant 0 : index
    %140 = vector.load %arg2[%c2_64, %c0_65, %c0_66] : memref<9x1x256xf32, #tpu.memory_space<vmem>>, vector<1x1x256xf32>
    %141 = vector.shape_cast %140 : vector<1x1x256xf32> to vector<1x256xf32>
    %142 = vector.broadcast %141 : vector<1x256xf32> to vector<32x256xf32>
    %143 = arith.mulf %139, %142 : vector<32x256xf32>
    %c2_67 = arith.constant 2 : index
    %c0_68 = arith.constant 0 : index
    %c0_69 = arith.constant 0 : index
    %144 = vector.load %arg6[%c2_67, %c0_68, %c0_69] : memref<9x32x1xf32, #tpu.memory_space<vmem>>, vector<1x32x1xf32>
    %145 = vector.shape_cast %144 : vector<1x32x1xf32> to vector<32x1xf32>
    %146 = vector.broadcast %145 : vector<32x1xf32> to vector<32x256xf32>
    %147 = arith.mulf %143, %146 : vector<32x256xf32>
    %148 = arith.addf %136, %147 : vector<32x256xf32>
    %149 = vector.extract_strided_slice %111 {offsets = [0, 255], sizes = [32, 1], strides = [1, 1]} : vector<32x256xf32> to vector<32x1xf32>
    %150 = vector.extract_strided_slice %111 {offsets = [0, 0], sizes = [32, 255], strides = [1, 1]} : vector<32x256xf32> to vector<32x255xf32>
    %151 = tpu.concatenate %149, %150 in 1 : vector<32x1xf32>, vector<32x255xf32> -> vector<32x256xf32>
    %c3_70 = arith.constant 3 : index
    %c0_71 = arith.constant 0 : index
    %c0_72 = arith.constant 0 : index
    %152 = vector.load %arg2[%c3_70, %c0_71, %c0_72] : memref<9x1x256xf32, #tpu.memory_space<vmem>>, vector<1x1x256xf32>
    %153 = vector.shape_cast %152 : vector<1x1x256xf32> to vector<1x256xf32>
    %154 = vector.broadcast %153 : vector<1x256xf32> to vector<32x256xf32>
    %155 = arith.mulf %151, %154 : vector<32x256xf32>
    %c3_73 = arith.constant 3 : index
    %c0_74 = arith.constant 0 : index
    %c0_75 = arith.constant 0 : index
    %156 = vector.load %arg6[%c3_73, %c0_74, %c0_75] : memref<9x32x1xf32, #tpu.memory_space<vmem>>, vector<1x32x1xf32>
    %157 = vector.shape_cast %156 : vector<1x32x1xf32> to vector<32x1xf32>
    %158 = vector.broadcast %157 : vector<32x1xf32> to vector<32x256xf32>
    %159 = arith.mulf %155, %158 : vector<32x256xf32>
    %160 = arith.addf %148, %159 : vector<32x256xf32>
    %c4_76 = arith.constant 4 : index
    %c0_77 = arith.constant 0 : index
    %c0_78 = arith.constant 0 : index
    %161 = vector.load %arg6[%c4_76, %c0_77, %c0_78] : memref<9x32x1xf32, #tpu.memory_space<vmem>>, vector<1x32x1xf32>
    %162 = vector.shape_cast %161 : vector<1x32x1xf32> to vector<32x1xf32>
    %163 = vector.broadcast %162 : vector<32x1xf32> to vector<32x256xf32>
    %164 = arith.mulf %111, %163 : vector<32x256xf32>
    %165 = arith.addf %160, %164 : vector<32x256xf32>
    %166 = vector.extract_strided_slice %111 {offsets = [0, 1], sizes = [32, 255], strides = [1, 1]} : vector<32x256xf32> to vector<32x255xf32>
    %167 = vector.extract_strided_slice %111 {offsets = [0, 0], sizes = [32, 1], strides = [1, 1]} : vector<32x256xf32> to vector<32x1xf32>
    %168 = tpu.concatenate %166, %167 in 1 : vector<32x255xf32>, vector<32x1xf32> -> vector<32x256xf32>
    %c5_79 = arith.constant 5 : index
    %c0_80 = arith.constant 0 : index
    %c0_81 = arith.constant 0 : index
    %169 = vector.load %arg2[%c5_79, %c0_80, %c0_81] : memref<9x1x256xf32, #tpu.memory_space<vmem>>, vector<1x1x256xf32>
    %170 = vector.shape_cast %169 : vector<1x1x256xf32> to vector<1x256xf32>
    %171 = vector.broadcast %170 : vector<1x256xf32> to vector<32x256xf32>
    %172 = arith.mulf %168, %171 : vector<32x256xf32>
    %c5_82 = arith.constant 5 : index
    %c0_83 = arith.constant 0 : index
    %c0_84 = arith.constant 0 : index
    %173 = vector.load %arg6[%c5_82, %c0_83, %c0_84] : memref<9x32x1xf32, #tpu.memory_space<vmem>>, vector<1x32x1xf32>
    %174 = vector.shape_cast %173 : vector<1x32x1xf32> to vector<32x1xf32>
    %175 = vector.broadcast %174 : vector<32x1xf32> to vector<32x256xf32>
    %176 = arith.mulf %172, %175 : vector<32x256xf32>
    %177 = arith.addf %165, %176 : vector<32x256xf32>
    %178 = vector.extract_strided_slice %111 {offsets = [0, 15], sizes = [32, 241], strides = [1, 1]} : vector<32x256xf32> to vector<32x241xf32>
    %179 = vector.extract_strided_slice %111 {offsets = [0, 0], sizes = [32, 15], strides = [1, 1]} : vector<32x256xf32> to vector<32x15xf32>
    %180 = tpu.concatenate %178, %179 in 1 : vector<32x241xf32>, vector<32x15xf32> -> vector<32x256xf32>
    %c6_85 = arith.constant 6 : index
    %c0_86 = arith.constant 0 : index
    %c0_87 = arith.constant 0 : index
    %181 = vector.load %arg2[%c6_85, %c0_86, %c0_87] : memref<9x1x256xf32, #tpu.memory_space<vmem>>, vector<1x1x256xf32>
    %182 = vector.shape_cast %181 : vector<1x1x256xf32> to vector<1x256xf32>
    %183 = vector.broadcast %182 : vector<1x256xf32> to vector<32x256xf32>
    %184 = arith.mulf %180, %183 : vector<32x256xf32>
    %c6_88 = arith.constant 6 : index
    %c0_89 = arith.constant 0 : index
    %c0_90 = arith.constant 0 : index
    %185 = vector.load %arg6[%c6_88, %c0_89, %c0_90] : memref<9x32x1xf32, #tpu.memory_space<vmem>>, vector<1x32x1xf32>
    %186 = vector.shape_cast %185 : vector<1x32x1xf32> to vector<32x1xf32>
    %187 = vector.broadcast %186 : vector<32x1xf32> to vector<32x256xf32>
    %188 = arith.mulf %184, %187 : vector<32x256xf32>
    %189 = arith.addf %177, %188 : vector<32x256xf32>
    %190 = vector.extract_strided_slice %111 {offsets = [0, 16], sizes = [32, 240], strides = [1, 1]} : vector<32x256xf32> to vector<32x240xf32>
    %191 = vector.extract_strided_slice %111 {offsets = [0, 0], sizes = [32, 16], strides = [1, 1]} : vector<32x256xf32> to vector<32x16xf32>
    %192 = tpu.concatenate %190, %191 in 1 : vector<32x240xf32>, vector<32x16xf32> -> vector<32x256xf32>
    %c7_91 = arith.constant 7 : index
    %c0_92 = arith.constant 0 : index
    %c0_93 = arith.constant 0 : index
    %193 = vector.load %arg2[%c7_91, %c0_92, %c0_93] : memref<9x1x256xf32, #tpu.memory_space<vmem>>, vector<1x1x256xf32>
    %194 = vector.shape_cast %193 : vector<1x1x256xf32> to vector<1x256xf32>
    %195 = vector.broadcast %194 : vector<1x256xf32> to vector<32x256xf32>
    %196 = arith.mulf %192, %195 : vector<32x256xf32>
    %c7_94 = arith.constant 7 : index
    %c0_95 = arith.constant 0 : index
    %c0_96 = arith.constant 0 : index
    %197 = vector.load %arg6[%c7_94, %c0_95, %c0_96] : memref<9x32x1xf32, #tpu.memory_space<vmem>>, vector<1x32x1xf32>
    %198 = vector.shape_cast %197 : vector<1x32x1xf32> to vector<32x1xf32>
    %199 = vector.broadcast %198 : vector<32x1xf32> to vector<32x256xf32>
    %200 = arith.mulf %196, %199 : vector<32x256xf32>
    %201 = arith.addf %189, %200 : vector<32x256xf32>
    %202 = vector.extract_strided_slice %111 {offsets = [0, 17], sizes = [32, 239], strides = [1, 1]} : vector<32x256xf32> to vector<32x239xf32>
    %203 = vector.extract_strided_slice %111 {offsets = [0, 0], sizes = [32, 17], strides = [1, 1]} : vector<32x256xf32> to vector<32x17xf32>
    %204 = tpu.concatenate %202, %203 in 1 : vector<32x239xf32>, vector<32x17xf32> -> vector<32x256xf32>
    %c8_97 = arith.constant 8 : index
    %c0_98 = arith.constant 0 : index
    %c0_99 = arith.constant 0 : index
    %205 = vector.load %arg2[%c8_97, %c0_98, %c0_99] : memref<9x1x256xf32, #tpu.memory_space<vmem>>, vector<1x1x256xf32>
    %206 = vector.shape_cast %205 : vector<1x1x256xf32> to vector<1x256xf32>
    %207 = vector.broadcast %206 : vector<1x256xf32> to vector<32x256xf32>
    %208 = arith.mulf %204, %207 : vector<32x256xf32>
    %c8_100 = arith.constant 8 : index
    %c0_101 = arith.constant 0 : index
    %c0_102 = arith.constant 0 : index
    %209 = vector.load %arg6[%c8_100, %c0_101, %c0_102] : memref<9x32x1xf32, #tpu.memory_space<vmem>>, vector<1x32x1xf32>
    %210 = vector.shape_cast %209 : vector<1x32x1xf32> to vector<32x1xf32>
    %211 = vector.broadcast %210 : vector<32x1xf32> to vector<32x256xf32>
    %212 = arith.mulf %208, %211 : vector<32x256xf32>
    %213 = arith.addf %201, %212 : vector<32x256xf32>
    %c0_103 = arith.constant 0 : index
    %c0_104 = arith.constant 0 : index
    %214 = vector.load %arg7[%c0_103, %c0_104] : memref<32x32xbf16, #tpu.memory_space<vmem>>, vector<32x32xbf16>
    %215 = arith.truncf %213 : vector<32x256xf32> to vector<32x256xbf16>
    %cst_105 = arith.constant dense<0.000000e+00> : vector<32x256xf32>
    %216 = tpu.matmul %214, %215, %cst_105 {dimension_numbers = #tpu.dot_dimension_numbers<[1], [0], [0], [1], [0, 0, 1, 1], [], []>} : vector<32x32xbf16>, vector<32x256xbf16>, vector<32x256xf32> -> vector<32x256xf32>
    %c0_106 = arith.constant 0 : index
    %c0_107 = arith.constant 0 : index
    %217 = vector.load %arg8[%c0_106, %c0_107] : memref<32x1xf32, #tpu.memory_space<vmem>>, vector<32x1xf32>
    %218 = vector.broadcast %217 : vector<32x1xf32> to vector<32x256xf32>
    %219 = arith.addf %216, %218 : vector<32x256xf32>
    %c0_108 = arith.constant 0 : index
    %c0_109 = arith.constant 0 : index
    %c0_110 = arith.constant 0 : index
    %220 = vector.load %arg1[%c0_108, %c0_109, %c0_110] : memref<1x32x256xf32, #tpu.memory_space<vmem>>, vector<1x32x256xf32>
    %221 = vector.shape_cast %220 : vector<1x32x256xf32> to vector<32x256xf32>
    %222 = arith.addf %219, %221 : vector<32x256xf32>
    %cst_111 = arith.constant 0.000000e+00 : f32
    %223 = vector.broadcast %cst_111 : f32 to vector<32x256xf32>
    %224 = arith.maximumf %222, %223 : vector<32x256xf32>
    %c0_112 = arith.constant 0 : index
    %c0_113 = arith.constant 0 : index
    %c0_114 = arith.constant 0 : index
    %225 = vector.load %arg9[%c0_112, %c0_113, %c0_114] : memref<1x32x256xf32, #tpu.memory_space<vmem>>, vector<1x32x256xf32>
    %226 = vector.shape_cast %225 : vector<1x32x256xf32> to vector<32x256xf32>
    %227 = vector.shape_cast %224 : vector<32x256xf32> to vector<1x32x256xf32>
    tpu.vector_store %arg9[%c0_112, %c0_113, %c0_114], %227 {strides = array<i32>} : memref<1x32x256xf32, #tpu.memory_space<vmem>>, vector<1x32x256xf32>,
    return
  }
  func.func @transform_0(%arg0: i32) -> (i32, i32, i32) {
    %c0_i32 = arith.constant 0 : i32
    %c0_i32_0 = arith.constant 0 : i32
    %c0_i32_1 = arith.constant 0 : i32
    return %arg0, %c0_i32, %c0_i32_0 : i32, i32, i32
  }
  func.func @transform_1(%arg0: i32) -> (i32, i32, i32) {
    %c0_i32 = arith.constant 0 : i32
    %c0_i32_0 = arith.constant 0 : i32
    %c0_i32_1 = arith.constant 0 : i32
    %c0_i32_2 = arith.constant 0 : i32
    return %c0_i32, %c0_i32_0, %c0_i32_1 : i32, i32, i32
  }
  func.func @transform_2(%arg0: i32) -> (i32, i32, i32) {
    %c0_i32 = arith.constant 0 : i32
    %c0_i32_0 = arith.constant 0 : i32
    %c0_i32_1 = arith.constant 0 : i32
    %c0_i32_2 = arith.constant 0 : i32
    return %c0_i32, %c0_i32_0, %c0_i32_1 : i32, i32, i32
  }
  func.func @transform_3(%arg0: i32) -> (i32, i32) {
    %c0_i32 = arith.constant 0 : i32
    %c0_i32_0 = arith.constant 0 : i32
    %c0_i32_1 = arith.constant 0 : i32
    return %c0_i32, %c0_i32_0 : i32, i32
  }
  func.func @transform_4(%arg0: i32) -> (i32, i32) {
    %c0_i32 = arith.constant 0 : i32
    %c0_i32_0 = arith.constant 0 : i32
    %c0_i32_1 = arith.constant 0 : i32
    return %c0_i32, %c0_i32_0 : i32, i32
  }
  func.func @transform_5(%arg0: i32) -> (i32, i32, i32) {
    %c0_i32 = arith.constant 0 : i32
    %c0_i32_0 = arith.constant 0 : i32
    %c0_i32_1 = arith.constant 0 : i32
    %c0_i32_2 = arith.constant 0 : i32
    return %c0_i32, %c0_i32_0, %c0_i32_1 : i32, i32, i32
  }
  func.func @transform_6(%arg0: i32) -> (i32, i32) {
    %c0_i32 = arith.constant 0 : i32
    %c0_i32_0 = arith.constant 0 : i32
    %c0_i32_1 = arith.constant 0 : i32
    return %c0_i32, %c0_i32_0 : i32, i32
  }
  func.func @transform_7(%arg0: i32) -> (i32, i32) {
    %c0_i32 = arith.constant 0 : i32
    %c0_i32_0 = arith.constant 0 : i32
    %c0_i32_1 = arith.constant 0 : i32
    return %c0_i32, %c0_i32_0 : i32, i32
  }
  func.func @transform_8(%arg0: i32) -> (i32, i32, i32) {
    %c0_i32 = arith.constant 0 : i32
    %c0_i32_0 = arith.constant 0 : i32
    %c0_i32_1 = arith.constant 0 : i32
    return %arg0, %c0_i32, %c0_i32_0 : i32, i32, i32
  }
}

</mosaic_0001>

<llo_original>
// kernel: squeeze.6
$region0: #{squeeze.6}
  %s0 = inlined_call_operand.vmem [shape: f32[32,3,3], index: 0, kind: input, shape index: {}]
  %s1 = inlined_call_operand.vmem [shape: f32[32,9], index: 1, kind: output, shape index: {}]
  $region1: #{squeeze.6} parent=0
    #allocation0 [shape = 'u8[12288]{0}', space=vmem, size = 0x3000, scoped, tag = 'scoped mem for input reshape']
    %s3 = sshllo.u32 0, 4
    %s4 = smul.addr 4, 2
    %s5 = scalar_lea.vmem %s0, %s4
    %v6 = vld [vmem:[%s5] sm:%s3]
    %s7 = scalar_lea.vmem [#allocation0], 16
    %8 = vst [vmem:[%s7] sm:%s3] %v6
    %s9 = scalar_lea.vmem %s0, 4
    %v10 = vld [vmem:[%s9] sm:%s3]
    %s11 = scalar_lea.vmem [#allocation0], 8
    %12 = vst [vmem:[%s11] sm:%s3] %v10
    %v13 = vld [vmem:[%s0] sm:%s3]
    %14 = vst [vmem:[#allocation0] sm:%s3] %v13
    %v15 = vld [vmem:[#allocation0] sm:$0x7]
    %vm16 = vcmask 261120
    %17 = vst.msk [vmem:[%s1] sm:$0x7] %vm16, %v15
    %s18 = scalar_lea.vmem [#allocation0], 8
    %v19 = vld [vmem:[%s18] sm:$0x7]
    %vm20 = vcmask 261120
    %s21 = scalar_lea.vmem %s1, 3
    %22 = vst.msk [vmem:[%s21] sm:$0x7] %vm20, %v19
    %s23 = scalar_lea.vmem [#allocation0], 16
    %v24 = vld [vmem:[%s23] sm:$0x7]
    %vm25 = vcmask 261120
    %s26 = scalar_lea.vmem %s1, 6
    %27 = vst.msk [vmem:[%s26] sm:$0x7] %vm25, %v24

// kernel: ds_block_pallas.1
$region0: #{ds_block_pallas.1}
  #allocation0 [shape = 'u32[]', space=smem, size = 0x4, offset = 0x4, fixed_abs, tag = 'smem constant byte address 0x4 - core index']
  #allocation1 [shape = 'u32[144,128]{1,0:T(1,128)}', space=vmem, size = 0x12000, scoped, tag = 'internal scratch']
  %s0 = inlined_call_operand.vmem [shape: f32[2,32,256], index: 0, kind: input, shape index: {}]
  %s1 = inlined_call_operand.vmem [shape: f32[9,1,256], index: 1, kind: input, shape index: {}]
  %s2 = inlined_call_operand.vmem [shape: f32[9,32,1], index: 2, kind: input, shape index: {}]
  %s3 = inlined_call_operand.vmem [shape: bf16[32,32], index: 3, kind: input, shape index: {}]
  %s4 = inlined_call_operand.vmem [shape: f32[32,1], index: 4, kind: input, shape index: {}]
  %s5 = inlined_call_operand.vmem [shape: f32[9,32,1], index: 5, kind: input, shape index: {}]
  %s6 = inlined_call_operand.vmem [shape: bf16[32,32], index: 6, kind: input, shape index: {}]
  %s7 = inlined_call_operand.vmem [shape: f32[32,1], index: 7, kind: input, shape index: {}]
  %s8 = inlined_call_operand.vmem [shape: f32[2,32,256], index: 8, kind: output, shape index: {}]
  %s9 = sld [smem:[#allocation0]]
  $region65: #{ds_block_pallas.1} parent=0
    _
  %s11 = ssub.s32 1, %s9
  %s12 = scalar_select 0, %s11, %s9
  loop: start=0, step=1, limit=4
  $region2: #{ds_block_pallas.1} parent=0 // loop_pre_header
    _
  $region3: #{ds_block_pallas.1} parent=0 // loop_header
    %s14 = sphi 0, %s18
    %p15 = scmp.ge.s32.totalorder %s14, 4
    %s24 = sphi 0, %s26
    %s27 = sphi 0, %s24
    %s28 = sphi 0, %s27
    %s44 = sphi 0, %s28
    %s48 = sphi 0, %s48
    %s50 = sphi 0, %s48
    %s51 = sphi 0, %s50
    %s65 = sphi 0, %s51
    %s69 = sphi 0, %s69
    %s71 = sphi 0, %s69
    %s72 = sphi 0, %s71
    %s86 = sphi 0, %s72
    %s90 = sphi 0, %s90
    %s92 = sphi 0, %s90
    %s93 = sphi 0, %s92
    %s107 = sphi 0, %s93
    %s111 = sphi 0, %s111
    %s113 = sphi 0, %s111
    %s114 = sphi 0, %s113
    %s128 = sphi 0, %s114
    %s132 = sphi 0, %s132
    %s134 = sphi 0, %s132
    %s135 = sphi 0, %s134
    %s149 = sphi 0, %s135
    %s153 = sphi 0, %s153
    %s155 = sphi 0, %s153
    %s156 = sphi 0, %s155
    %s170 = sphi 0, %s156
    %s174 = sphi 0, %s174
    %s176 = sphi 0, %s174
    %s177 = sphi 0, %s176
    %s191 = sphi 0, %s177
    %s197 = sphi 0, %s199
    %s200 = sphi 0, %s197
    %s201 = sphi 0, %s200
    %s217 = sphi 0, %s201
  $region4: #{ds_block_pallas.1} parent=0 // loop_header_branch
    %17 = sbr.rel (%p15) target = $region8
  $region5: #{ds_block_pallas.1} parent=0 // loop_body
    %s19 = ssub.s32 %s14, 1
    %s20 = ssub.s32 %s14, 2
    %s21 = sadd.s32 %s14, 1
    %s22 = ssub.s32 %s14, %s21
    %p23 = scmp.eq.s32.totalorder %s22, 0
    %s25 = sadd.s32 %s24, 1
    %s26 = scalar_select %p23, %s24, %s25
    %p29 = pneg %p23
    %p30 = scmp.eq.s32.totalorder %s14, 1
    %p31 = por %p29, %p30
    %p32 = scmp.ne.s32.totalorder %s24, %s27
    %p33 = scmp.eq.s32.totalorder %s14, 0
    %p34 = por %p32, %p33
    %p35 = scmp.ne.s32.totalorder %s24, %s27
    %p36 = scmp.eq.s32.totalorder %s19, 1
    %p37 = por %p35, %p36
    %p38 = scmp.ne.s32.totalorder %s27, %s28
    %p39 = scmp.eq.s32.totalorder %s19, 0
    %p40 = por %p38, %p39
    %p41 = scmp.ne.s32.totalorder %s27, %s28
    %p42 = scmp.eq.s32.totalorder %s20, 1
    %p43 = por %p41, %p42
    %p45 = scmp.ne.s32.totalorder %s28, %s44
    %p46 = scmp.eq.s32.totalorder %s20, 0
    %p47 = por %p45, %p46
    %s49 = sadd.s32 %s48, 1
    %p52 = scmp.eq.s32.totalorder %s14, 1
    %p53 = scmp.ne.s32.totalorder %s48, %s50
    %p54 = scmp.eq.s32.totalorder %s14, 0
    %p55 = por %p53, %p54
    %p56 = scmp.ne.s32.totalorder %s48, %s50
    %p57 = scmp.eq.s32.totalorder %s19, 1
    %p58 = por %p56, %p57
    %p59 = scmp.ne.s32.totalorder %s50, %s51
    %p60 = scmp.eq.s32.totalorder %s19, 0
    %p61 = por %p59, %p60
    %p62 = scmp.ne.s32.totalorder %s50, %s51
    %p63 = scmp.eq.s32.totalorder %s20, 1
    %p64 = por %p62, %p63
    %p66 = scmp.ne.s32.totalorder %s51, %s65
    %p67 = scmp.eq.s32.totalorder %s20, 0
    %p68 = por %p66, %p67
    %s70 = sadd.s32 %s69, 1
    %p73 = scmp.eq.s32.totalorder %s14, 1
    %p74 = scmp.ne.s32.totalorder %s69, %s71
    %p75 = scmp.eq.s32.totalorder %s14, 0
    %p76 = por %p74, %p75
    %p77 = scmp.ne.s32.totalorder %s69, %s71
    %p78 = scmp.eq.s32.totalorder %s19, 1
    %p79 = por %p77, %p78
    %p80 = scmp.ne.s32.totalorder %s71, %s72
    %p81 = scmp.eq.s32.totalorder %s19, 0
    %p82 = por %p80, %p81
    %p83 = scmp.ne.s32.totalorder %s71, %s72
    %p84 = scmp.eq.s32.totalorder %s20, 1
    %p85 = por %p83, %p84
    %p87 = scmp.ne.s32.totalorder %s72, %s86
    %p88 = scmp.eq.s32.totalorder %s20, 0
    %p89 = por %p87, %p88
    %s91 = sadd.s32 %s90, 1
    %p94 = scmp.eq.s32.totalorder %s14, 1
    %p95 = scmp.ne.s32.totalorder %s90, %s92
    %p96 = scmp.eq.s32.totalorder %s14, 0
    %p97 = por %p95, %p96
    %p98 = scmp.ne.s32.totalorder %s90, %s92
    %p99 = scmp.eq.s32.totalorder %s19, 1
    %p100 = por %p98, %p99
    %p101 = scmp.ne.s32.totalorder %s92, %s93
    %p102 = scmp.eq.s32.totalorder %s19, 0
    %p103 = por %p101, %p102
    %p104 = scmp.ne.s32.totalorder %s92, %s93
    %p105 = scmp.eq.s32.totalorder %s20, 1
    %p106 = por %p104, %p105
    %p108 = scmp.ne.s32.totalorder %s93, %s107
    %p109 = scmp.eq.s32.totalorder %s20, 0
    %p110 = por %p108, %p109
    %s112 = sadd.s32 %s111, 1
    %p115 = scmp.eq.s32.totalorder %s14, 1
    %p116 = scmp.ne.s32.totalorder %s111, %s113
    %p117 = scmp.eq.s32.totalorder %s14, 0
    %p118 = por %p116, %p117
    %p119 = scmp.ne.s32.totalorder %s111, %s113
    %p120 = scmp.eq.s32.totalorder %s19, 1
    %p121 = por %p119, %p120
    %p122 = scmp.ne.s32.totalorder %s113, %s114
    %p123 = scmp.eq.s32.totalorder %s19, 0
    %p124 = por %p122, %p123
    %p125 = scmp.ne.s32.totalorder %s113, %s114
    %p126 = scmp.eq.s32.totalorder %s20, 1
    %p127 = por %p125, %p126
    %p129 = scmp.ne.s32.totalorder %s114, %s128
    %p130 = scmp.eq.s32.totalorder %s20, 0
    %p131 = por %p129, %p130
    %s133 = sadd.s32 %s132, 1
    %p136 = scmp.eq.s32.totalorder %s14, 1
    %p137 = scmp.ne.s32.totalorder %s132, %s134
    %p138 = scmp.eq.s32.totalorder %s14, 0
    %p139 = por %p137, %p138
    %p140 = scmp.ne.s32.totalorder %s132, %s134
    %p141 = scmp.eq.s32.totalorder %s19, 1
    %p142 = por %p140, %p141
    %p143 = scmp.ne.s32.totalorder %s134, %s135
    %p144 = scmp.eq.s32.totalorder %s19, 0
    %p145 = por %p143, %p144
    %p146 = scmp.ne.s32.totalorder %s134, %s135
    %p147 = scmp.eq.s32.totalorder %s20, 1
    %p148 = por %p146, %p147
    %p150 = scmp.ne.s32.totalorder %s135, %s149
    %p151 = scmp.eq.s32.totalorder %s20, 0
    %p152 = por %p150, %p151
    %s154 = sadd.s32 %s153, 1
    %p157 = scmp.eq.s32.totalorder %s14, 1
    %p158 = scmp.ne.s32.totalorder %s153, %s155
    %p159 = scmp.eq.s32.totalorder %s14, 0
    %p160 = por %p158, %p159
    %p161 = scmp.ne.s32.totalorder %s153, %s155
    %p162 = scmp.eq.s32.totalorder %s19, 1
    %p163 = por %p161, %p162
    %p164 = scmp.ne.s32.totalorder %s155, %s156
    %p165 = scmp.eq.s32.totalorder %s19, 0
    %p166 = por %p164, %p165
    %p167 = scmp.ne.s32.totalorder %s155, %s156
    %p168 = scmp.eq.s32.totalorder %s20, 1
    %p169 = por %p167, %p168
    %p171 = scmp.ne.s32.totalorder %s156, %s170
    %p172 = scmp.eq.s32.totalorder %s20, 0
    %p173 = por %p171, %p172
    %s175 = sadd.s32 %s174, 1
    %p178 = scmp.eq.s32.totalorder %s14, 1
    %p179 = scmp.ne.s32.totalorder %s174, %s176
    %p180 = scmp.eq.s32.totalorder %s14, 0
    %p181 = por %p179, %p180
    %p182 = scmp.ne.s32.totalorder %s174, %s176
    %p183 = scmp.eq.s32.totalorder %s19, 1
    %p184 = por %p182, %p183
    %p185 = scmp.ne.s32.totalorder %s176, %s177
    %p186 = scmp.eq.s32.totalorder %s19, 0
    %p187 = por %p185, %p186
    %p188 = scmp.ne.s32.totalorder %s176, %s177
    %p189 = scmp.eq.s32.totalorder %s20, 1
    %p190 = por %p188, %p189
    %p192 = scmp.ne.s32.totalorder %s177, %s191
    %p193 = scmp.eq.s32.totalorder %s20, 0
    %p194 = por %p192, %p193
    %s195 = ssub.s32 %s14, %s21
    %p196 = scmp.eq.s32.totalorder %s195, 0
    %s198 = sadd.s32 %s197, 1
    %s199 = scalar_select %p196, %s197, %s198
    %p202 = pneg %p196
    %p203 = scmp.eq.s32.totalorder %s14, 1
    %p204 = por %p202, %p203
    %p205 = scmp.ne.s32.totalorder %s197, %s200
    %p206 = scmp.eq.s32.totalorder %s14, 0
    %p207 = por %p205, %p206
    %p208 = scmp.ne.s32.totalorder %s197, %s200
    %p209 = scmp.eq.s32.totalorder %s19, 1
    %p210 = por %p208, %p209
    %p211 = scmp.ne.s32.totalorder %s200, %s201
    %p212 = scmp.eq.s32.totalorder %s19, 0
    %p213 = por %p211, %p212
    %p214 = scmp.ne.s32.totalorder %s200, %s201
    %p215 = scmp.eq.s32.totalorder %s20, 1
    %p216 = por %p214, %p215
    %p218 = scmp.ne.s32.totalorder %s201, %s217
    %p219 = scmp.eq.s32.totalorder %s20, 0
    %p220 = por %p218, %p219
    %p221 = scmp.le.s32.totalorder 1, %s14
    %p222 = scmp.lt.s32.totalorder %s14, 3
    %p223 = pnand %p221, %p222
    %p224 = pneg %p223
    // Predicated region
    $region9: #{ds_block_pallas.1} parent=5 // pred_check
      _
    $region10: #{ds_block_pallas.1} parent=5 // pred_check_branch
      %226 = sbr.rel (%p223) target = $region12
    $region11: #{ds_block_pallas.1} parent=5 // pred_region
      %s227 = ssub.s32 %s14, 1
      // Predicated region
      $region13: #{ds_block_pallas.1} parent=11 // pred_check
        %p228 = pneg %p61
      $region14: #{ds_block_pallas.1} parent=11 // pred_check_branch
        %230 = sbr.rel (%p228) target = $region16
      $region15: #{ds_block_pallas.1} parent=11 // pred_region
        _
      $region16: #{ds_block_pallas.1} parent=11 // pred_fallthru
        _
      // Predicated region
      $region17: #{ds_block_pallas.1} parent=11 // pred_check
        %p231 = pneg %p82
      $region18: #{ds_block_pallas.1} parent=11 // pred_check_branch
        %233 = sbr.rel (%p231) target = $region20
      $region19: #{ds_block_pallas.1} parent=11 // pred_region
        _
      $region20: #{ds_block_pallas.1} parent=11 // pred_fallthru
        _
      // Predicated region
      $region21: #{ds_block_pallas.1} parent=11 // pred_check
        %p234 = pneg %p103
      $region22: #{ds_block_pallas.1} parent=11 // pred_check_branch
        %236 = sbr.rel (%p234) target = $region24
      $region23: #{ds_block_pallas.1} parent=11 // pred_region
        _
      $region24: #{ds_block_pallas.1} parent=11 // pred_fallthru
        _
      // Predicated region
      $region25: #{ds_block_pallas.1} parent=11 // pred_check
        %p237 = pneg %p124
      $region26: #{ds_block_pallas.1} parent=11 // pred_check_branch
        %239 = sbr.rel (%p237) target = $region28
      $region27: #{ds_block_pallas.1} parent=11 // pred_region
        _
      $region28: #{ds_block_pallas.1} parent=11 // pred_fallthru
        _
      // Predicated region
      $region29: #{ds_block_pallas.1} parent=11 // pred_check
        %p240 = pneg %p145
      $region30: #{ds_block_pallas.1} parent=11 // pred_check_branch
        %242 = sbr.rel (%p240) target = $region32
      $region31: #{ds_block_pallas.1} parent=11 // pred_region
        _
      $region32: #{ds_block_pallas.1} parent=11 // pred_fallthru
        _
      // Predicated region
      $region33: #{ds_block_pallas.1} parent=11 // pred_check
        %p243 = pneg %p166
      $region34: #{ds_block_pallas.1} parent=11 // pred_check_branch
        %245 = sbr.rel (%p243) target = $region36
      $region35: #{ds_block_pallas.1} parent=11 // pred_region
        _
      $region36: #{ds_block_pallas.1} parent=11 // pred_fallthru
        _
      // Predicated region
      $region37: #{ds_block_pallas.1} parent=11 // pred_check
        %p246 = pneg %p187
      $region38: #{ds_block_pallas.1} parent=11 // pred_check_branch
        %248 = sbr.rel (%p246) target = $region40
      $region39: #{ds_block_pallas.1} parent=11 // pred_region
        _
      $region40: #{ds_block_pallas.1} parent=11 // pred_fallthru
        _
    $region12: #{ds_block_pallas.1} parent=5 // pred_fallthru
      _
    %p249 = scmp.lt.s32.totalorder %s14, 2
    // Predicated region
    $region41: #{ds_block_pallas.1} parent=5 // pred_check
      %p250 = pneg %p249
    $region42: #{ds_block_pallas.1} parent=5 // pred_check_branch
      %252 = sbr.rel (%p250) target = $region44
    $region43: #{ds_block_pallas.1} parent=5 // pred_region
      // Predicated region
      $region45: #{ds_block_pallas.1} parent=43 // pred_check
        %p253 = pneg %p34
      $region46: #{ds_block_pallas.1} parent=43 // pred_check_branch
        %255 = sbr.rel (%p253) target = $region48
      $region47: #{ds_block_pallas.1} parent=43 // pred_region
        %p256 = scmp.lt.s32.totalorder %s14, 1
        %s257 = scalar_select %p256, %s14, 1
        %s258 = smul.addr %s257, 8
        %s259 = smul.addr %s258, 8
        %s260 = scalar_lea.vmem %s0, %s259
      $region48: #{ds_block_pallas.1} parent=43 // pred_fallthru
        _
    $region44: #{ds_block_pallas.1} parent=5 // pred_fallthru
      _
    %p261 = scmp.le.s32.totalorder 1, %s14
    %p262 = scmp.lt.s32.totalorder %s14, 3
    %p263 = pnand %p261, %p262
    %p264 = pneg %p263
    // Predicated region
    $region49: #{ds_block_pallas.1} parent=5 // pred_check
      _
    $region50: #{ds_block_pallas.1} parent=5 // pred_check_branch
      %266 = sbr.rel (%p263) target = $region52
    $region51: #{ds_block_pallas.1} parent=5 // pred_region
      %s267 = ssub.s32 %s14, 1
      %p268 = scmp.lt.s32.totalorder %s19, 1
      %s269 = scalar_select %p268, %s19, 1
      %s270 = smul.addr %s269, 8
      %s271 = smul.addr %s270, 8
      %s272 = scalar_lea.vmem %s0, %s271
      %p273 = pneg %p40
      %p274 = pneg %p37
      %p275 = pneg %p61
      %p276 = pneg %p58
      %p277 = pneg %p82
      %p278 = pneg %p79
      %p279 = pneg %p103
      %p280 = pneg %p100
      %p281 = pneg %p124
      %p282 = pneg %p121
      %p283 = pneg %p145
      %p284 = pneg %p142
      %p285 = pneg %p166
      %p286 = pneg %p163
      %p287 = pneg %p187
      %p288 = pneg %p184
      %p289 = pneg %p213
      %p290 = pneg %p210
      %p291 = scmp.lt.s32.totalorder %s19, 1
      %s292 = scalar_select %p291, %s19, 1
      %s293 = smul.addr %s292, 8
      %s294 = smul.addr %s293, 8
      %s295 = scalar_lea.vmem %s8, %s294
      %p296 = scmp.lt.s32.totalorder %s19, 1
      %s297 = scalar_select %p296, %s19, 1
      %s298 = smul.addr %s297, 8
      %s299 = smul.addr %s298, 8
      %s300 = scalar_lea.vmem %s0, %s299
      %p301 = scmp.lt.s32.totalorder %s19, 1
      %s302 = scalar_select %p301, %s19, 1
      %s303 = smul.addr %s302, 8
      %s304 = smul.addr %s303, 8
      %s305 = scalar_lea.vmem %s8, %s304
      %v307 = vld [vmem:[%s300] sm:$0xff]
      %v308 = vld [vmem:[%s300 + $0x8] sm:$0xff]
      %v309 = vld [vmem:[%s300 + $0x10] sm:$0xff]
      %v310 = vld [vmem:[%s300 + $0x18] sm:$0xff]
      %v311 = vld [vmem:[%s300 + $0x20] sm:$0xff]
      %v312 = vld [vmem:[%s300 + $0x28] sm:$0xff]
      %v313 = vld [vmem:[%s300 + $0x30] sm:$0xff]
      %v314 = vld [vmem:[%s300 + $0x38] sm:$0xff]
      %319 = vrot.lane.b32.xlu0 %v308, 17
      %v320 = vpop.permute.xlu0 %319
      %321 = vrot.lane.b32.xlu0 %v310, 17
      %v322 = vpop.permute.xlu0 %321
      %323 = vrot.lane.b32.xlu0 %v312, 17
      %v324 = vpop.permute.xlu0 %323
      %325 = vrot.lane.b32.xlu0 %v314, 17
      %v326 = vpop.permute.xlu0 %325
      %335 = vrot.lane.b32.xlu0 %v307, 17
      %v336 = vpop.permute.xlu0 %335
      %337 = vrot.lane.b32.xlu0 %v309, 17
      %v338 = vpop.permute.xlu0 %337
      %339 = vrot.lane.b32.xlu0 %v311, 17
      %v340 = vpop.permute.xlu0 %339
      %341 = vrot.lane.b32.xlu0 %v313, 17
      %v342 = vpop.permute.xlu0 %341
      %vm343 = vcmask 138240
      %v344 = vsel %vm343, %v336, %v320
      %v345 = vsel %vm343, %v338, %v322
      %v346 = vsel %vm343, %v340, %v324
      %v347 = vsel %vm343, %v342, %v326
      %v356 = vsel %vm343, %v320, %v336
      %v357 = vsel %vm343, %v322, %v338
      %v358 = vsel %vm343, %v324, %v340
      %v359 = vsel %vm343, %v326, %v342
      %v360 = vld [vmem:[%s1] sm:$0x3]
      %v362 = vlaneseq
      %v363 = vshrl.u32 %v362, 7
      %v364 = vsub.s32 0, %v363
      %v365 = vrot.slane %v360, %v364
      %v366 = vlaneseq
      %v367 = vshrl.u32 %v366, 7
      %v368 = vsub.s32 1, %v367
      %v369 = vrot.slane %v360, %v368
      %v372 = vmul.f32 %v356, %v365
      %v373 = vmul.f32 %v344, %v369
      %v374 = vmul.f32 %v357, %v365
      %v375 = vmul.f32 %v345, %v369
      %v376 = vmul.f32 %v358, %v365
      %v377 = vmul.f32 %v346, %v369
      %v378 = vmul.f32 %v359, %v365
      %v379 = vmul.f32 %v347, %v369
      %v380 = vld [vmem:[%s2] sm:$0xff]
      %v381 = vld [vmem:[%s2 + $0x8] sm:$0xff]
      %v382 = vld [vmem:[%s2 + $0x10] sm:$0xff]
      %v383 = vld [vmem:[%s2 + $0x18] sm:$0xff]
      %385 = vset.pattern.permute.xlu0 0
      %386 = vperm.xlu0 %385, %v380
      %v387 = vpop.permute.xlu0 %386
      %390 = vset.pattern.permute.xlu0 0
      %391 = vperm.xlu0 %390, %v381
      %v392 = vpop.permute.xlu0 %391
      %395 = vset.pattern.permute.xlu0 0
      %396 = vperm.xlu0 %395, %v382
      %v397 = vpop.permute.xlu0 %396
      %400 = vset.pattern.permute.xlu0 0
      %401 = vperm.xlu0 %400, %v383
      %v402 = vpop.permute.xlu0 %401
      %v404 = vmul.f32 %v372, %v387
      %v405 = vmul.f32 %v373, %v387
      %v406 = vmul.f32 %v374, %v392
      %v407 = vmul.f32 %v375, %v392
      %v408 = vmul.f32 %v376, %v397
      %v409 = vmul.f32 %v377, %v397
      %v410 = vmul.f32 %v378, %v402
      %v411 = vmul.f32 %v379, %v402
      %v412 = vadd.f32 %v404, 0.0
      %v413 = vadd.f32 %v405, 0.0
      %v414 = vadd.f32 %v406, 0.0
      %v415 = vadd.f32 %v407, 0.0
      %v416 = vadd.f32 %v408, 0.0
      %v417 = vadd.f32 %v409, 0.0
      %v418 = vadd.f32 %v410, 0.0
      %v419 = vadd.f32 %v411, 0.0
      %420 = vrot.lane.b32.xlu0 %v308, 16
      %v421 = vpop.permute.xlu0 %420
      %422 = vrot.lane.b32.xlu0 %v310, 16
      %v423 = vpop.permute.xlu0 %422
      %424 = vrot.lane.b32.xlu0 %v312, 16
      %v425 = vpop.permute.xlu0 %424
      %426 = vrot.lane.b32.xlu0 %v314, 16
      %v427 = vpop.permute.xlu0 %426
      %432 = vrot.lane.b32.xlu0 %v307, 16
      %v433 = vpop.permute.xlu0 %432
      %434 = vrot.lane.b32.xlu0 %v309, 16
      %v435 = vpop.permute.xlu0 %434
      %436 = vrot.lane.b32.xlu0 %v311, 16
      %v437 = vpop.permute.xlu0 %436
      %438 = vrot.lane.b32.xlu0 %v313, 16
      %v439 = vpop.permute.xlu0 %438
      %vm440 = vcmask 130048
      %v441 = vsel %vm440, %v433, %v421
      %v442 = vsel %vm440, %v435, %v423
      %v443 = vsel %vm440, %v437, %v425
      %v444 = vsel %vm440, %v439, %v427
      %v453 = vsel %vm440, %v421, %v433
      %v454 = vsel %vm440, %v423, %v435
      %v455 = vsel %vm440, %v425, %v437
      %v456 = vsel %vm440, %v427, %v439
      %s457 = scalar_lea.vmem %s1, 2
      %v458 = vld [vmem:[%s457] sm:$0x3]
      %v460 = vlaneseq
      %v461 = vshrl.u32 %v460, 7
      %v462 = vsub.s32 0, %v461
      %v463 = vrot.slane %v458, %v462
      %v464 = vlaneseq
      %v465 = vshrl.u32 %v464, 7
      %v466 = vsub.s32 1, %v465
      %v467 = vrot.slane %v458, %v466
      %v470 = vmul.f32 %v453, %v463
      %v471 = vmul.f32 %v441, %v467
      %v472 = vmul.f32 %v454, %v463
      %v473 = vmul.f32 %v442, %v467
      %v474 = vmul.f32 %v455, %v463
      %v475 = vmul.f32 %v443, %v467
      %v476 = vmul.f32 %v456, %v463
      %v477 = vmul.f32 %v444, %v467
      %s478 = scalar_lea.vmem %s2, 32
      %v479 = vld [vmem:[%s478] sm:$0xff]
      %v480 = vld [vmem:[%s478 + $0x8] sm:$0xff]
      %v481 = vld [vmem:[%s478 + $0x10] sm:$0xff]
      %v482 = vld [vmem:[%s478 + $0x18] sm:$0xff]
      %484 = vset.pattern.permute.xlu0 0
      %485 = vperm.xlu0 %484, %v479
      %v486 = vpop.permute.xlu0 %485
      %489 = vset.pattern.permute.xlu0 0
      %490 = vperm.xlu0 %489, %v480
      %v491 = vpop.permute.xlu0 %490
      %494 = vset.pattern.permute.xlu0 0
      %495 = vperm.xlu0 %494, %v481
      %v496 = vpop.permute.xlu0 %495
      %499 = vset.pattern.permute.xlu0 0
      %500 = vperm.xlu0 %499, %v482
      %v501 = vpop.permute.xlu0 %500
      %v503 = vmul.f32 %v470, %v486
      %v504 = vmul.f32 %v471, %v486
      %v505 = vmul.f32 %v472, %v491
      %v506 = vmul.f32 %v473, %v491
      %v507 = vmul.f32 %v474, %v496
      %v508 = vmul.f32 %v475, %v496
      %v509 = vmul.f32 %v476, %v501
      %v510 = vmul.f32 %v477, %v501
      %v511 = vadd.f32 %v412, %v503
      %v512 = vadd.f32 %v413, %v504
      %v513 = vadd.f32 %v414, %v505
      %v514 = vadd.f32 %v415, %v506
      %v515 = vadd.f32 %v416, %v507
      %v516 = vadd.f32 %v417, %v508
      %v517 = vadd.f32 %v418, %v509
      %v518 = vadd.f32 %v419, %v510
      %519 = vrot.lane.b32.xlu0 %v308, 15
      %v520 = vpop.permute.xlu0 %519
      %521 = vrot.lane.b32.xlu0 %v310, 15
      %v522 = vpop.permute.xlu0 %521
      %523 = vrot.lane.b32.xlu0 %v312, 15
      %v524 = vpop.permute.xlu0 %523
      %525 = vrot.lane.b32.xlu0 %v314, 15
      %v526 = vpop.permute.xlu0 %525
      %531 = vrot.lane.b32.xlu0 %v307, 15
      %v532 = vpop.permute.xlu0 %531
      %533 = vrot.lane.b32.xlu0 %v309, 15
      %v534 = vpop.permute.xlu0 %533
      %535 = vrot.lane.b32.xlu0 %v311, 15
      %v536 = vpop.permute.xlu0 %535
      %537 = vrot.lane.b32.xlu0 %v313, 15
      %v538 = vpop.permute.xlu0 %537
      %vm539 = vcmask 121856
      %v540 = vsel %vm539, %v532, %v520
      %v541 = vsel %vm539, %v534, %v522
      %v542 = vsel %vm539, %v536, %v524
      %v543 = vsel %vm539, %v538, %v526
      %v552 = vsel %vm539, %v520, %v532
      %v553 = vsel %vm539, %v522, %v534
      %v554 = vsel %vm539, %v524, %v536
      %v555 = vsel %vm539, %v526, %v538
      %s556 = scalar_lea.vmem %s1, 4
      %v557 = vld [vmem:[%s556] sm:$0x3]
      %v559 = vlaneseq
      %v560 = vshrl.u32 %v559, 7
      %v561 = vsub.s32 0, %v560
      %v562 = vrot.slane %v557, %v561
      %v563 = vlaneseq
      %v564 = vshrl.u32 %v563, 7
      %v565 = vsub.s32 1, %v564
      %v566 = vrot.slane %v557, %v565
      %v569 = vmul.f32 %v552, %v562
      %v570 = vmul.f32 %v540, %v566
      %v571 = vmul.f32 %v553, %v562
      %v572 = vmul.f32 %v541, %v566
      %v573 = vmul.f32 %v554, %v562
      %v574 = vmul.f32 %v542, %v566
      %v575 = vmul.f32 %v555, %v562
      %v576 = vmul.f32 %v543, %v566
      %s577 = scalar_lea.vmem %s2, 64
      %v578 = vld [vmem:[%s577] sm:$0xff]
      %v579 = vld [vmem:[%s577 + $0x8] sm:$0xff]
      %v580 = vld [vmem:[%s577 + $0x10] sm:$0xff]
      %v581 = vld [vmem:[%s577 + $0x18] sm:$0xff]
      %583 = vset.pattern.permute.xlu0 0
      %584 = vperm.xlu0 %583, %v578
      %v585 = vpop.permute.xlu0 %584
      %588 = vset.pattern.permute.xlu0 0
      %589 = vperm.xlu0 %588, %v579
      %v590 = vpop.permute.xlu0 %589
      %593 = vset.pattern.permute.xlu0 0
      %594 = vperm.xlu0 %593, %v580
      %v595 = vpop.permute.xlu0 %594
      %598 = vset.pattern.permute.xlu0 0
      %599 = vperm.xlu0 %598, %v581
      %v600 = vpop.permute.xlu0 %599
      %v602 = vmul.f32 %v569, %v585
      %v603 = vmul.f32 %v570, %v585
      %v604 = vmul.f32 %v571, %v590
      %v605 = vmul.f32 %v572, %v590
      %v606 = vmul.f32 %v573, %v595
      %v607 = vmul.f32 %v574, %v595
      %v608 = vmul.f32 %v575, %v600
      %v609 = vmul.f32 %v576, %v600
      %v610 = vadd.f32 %v511, %v602
      %v611 = vadd.f32 %v512, %v603
      %v612 = vadd.f32 %v513, %v604
      %v613 = vadd.f32 %v514, %v605
      %v614 = vadd.f32 %v515, %v606
      %v615 = vadd.f32 %v516, %v607
      %v616 = vadd.f32 %v517, %v608
      %v617 = vadd.f32 %v518, %v609
      %618 = vrot.lane.b32.xlu0 %v308, 1
      %v619 = vpop.permute.xlu0 %618
      %620 = vrot.lane.b32.xlu0 %v310, 1
      %v621 = vpop.permute.xlu0 %620
      %622 = vrot.lane.b32.xlu0 %v312, 1
      %v623 = vpop.permute.xlu0 %622
      %624 = vrot.lane.b32.xlu0 %v314, 1
      %v625 = vpop.permute.xlu0 %624
      %630 = vrot.lane.b32.xlu0 %v307, 1
      %v631 = vpop.permute.xlu0 %630
      %632 = vrot.lane.b32.xlu0 %v309, 1
      %v633 = vpop.permute.xlu0 %632
      %634 = vrot.lane.b32.xlu0 %v311, 1
      %v635 = vpop.permute.xlu0 %634
      %636 = vrot.lane.b32.xlu0 %v313, 1
      %v637 = vpop.permute.xlu0 %636
      %vm638 = vcmask 7168
      %v639 = vsel %vm638, %v631, %v619
      %v640 = vsel %vm638, %v633, %v621
      %v641 = vsel %vm638, %v635, %v623
      %v642 = vsel %vm638, %v637, %v625
      %v651 = vsel %vm638, %v619, %v631
      %v652 = vsel %vm638, %v621, %v633
      %v653 = vsel %vm638, %v623, %v635
      %v654 = vsel %vm638, %v625, %v637
      %s655 = scalar_lea.vmem %s1, 6
      %v656 = vld [vmem:[%s655] sm:$0x3]
      %v658 = vlaneseq
      %v659 = vshrl.u32 %v658, 7
      %v660 = vsub.s32 0, %v659
      %v661 = vrot.slane %v656, %v660
      %v662 = vlaneseq
      %v663 = vshrl.u32 %v662, 7
      %v664 = vsub.s32 1, %v663
      %v665 = vrot.slane %v656, %v664
      %v668 = vmul.f32 %v651, %v661
      %v669 = vmul.f32 %v639, %v665
      %v670 = vmul.f32 %v652, %v661
      %v671 = vmul.f32 %v640, %v665
      %v672 = vmul.f32 %v653, %v661
      %v673 = vmul.f32 %v641, %v665
      %v674 = vmul.f32 %v654, %v661
      %v675 = vmul.f32 %v642, %v665
      %s676 = scalar_lea.vmem %s2, 96
      %v677 = vld [vmem:[%s676] sm:$0xff]
      %v678 = vld [vmem:[%s676 + $0x8] sm:$0xff]
      %v679 = vld [vmem:[%s676 + $0x10] sm:$0xff]
      %v680 = vld [vmem:[%s676 + $0x18] sm:$0xff]
      %682 = vset.pattern.permute.xlu0 0
      %683 = vperm.xlu0 %682, %v677
      %v684 = vpop.permute.xlu0 %683
      %687 = vset.pattern.permute.xlu0 0
      %688 = vperm.xlu0 %687, %v678
      %v689 = vpop.permute.xlu0 %688
      %692 = vset.pattern.permute.xlu0 0
      %693 = vperm.xlu0 %692, %v679
      %v694 = vpop.permute.xlu0 %693
      %697 = vset.pattern.permute.xlu0 0
      %698 = vperm.xlu0 %697, %v680
      %v699 = vpop.permute.xlu0 %698
      %v701 = vmul.f32 %v668, %v684
      %v702 = vmul.f32 %v669, %v684
      %v703 = vmul.f32 %v670, %v689
      %v704 = vmul.f32 %v671, %v689
      %v705 = vmul.f32 %v672, %v694
      %v706 = vmul.f32 %v673, %v694
      %v707 = vmul.f32 %v674, %v699
      %v708 = vmul.f32 %v675, %v699
      %v709 = vadd.f32 %v610, %v701
      %v710 = vadd.f32 %v611, %v702
      %v711 = vadd.f32 %v612, %v703
      %v712 = vadd.f32 %v613, %v704
      %v713 = vadd.f32 %v614, %v705
      %v714 = vadd.f32 %v615, %v706
      %v715 = vadd.f32 %v616, %v707
      %v716 = vadd.f32 %v617, %v708
      %s717 = scalar_lea.vmem %s2, 128
      %v718 = vld [vmem:[%s717] sm:$0xff]
      %v719 = vld [vmem:[%s717 + $0x8] sm:$0xff]
      %v720 = vld [vmem:[%s717 + $0x10] sm:$0xff]
      %v721 = vld [vmem:[%s717 + $0x18] sm:$0xff]
      %723 = vset.pattern.permute.xlu0 0
      %724 = vperm.xlu0 %723, %v718
      %v725 = vpop.permute.xlu0 %724
      %728 = vset.pattern.permute.xlu0 0
      %729 = vperm.xlu0 %728, %v719
      %v730 = vpop.permute.xlu0 %729
      %733 = vset.pattern.permute.xlu0 0
      %734 = vperm.xlu0 %733, %v720
      %v735 = vpop.permute.xlu0 %734
      %738 = vset.pattern.permute.xlu0 0
      %739 = vperm.xlu0 %738, %v721
      %v740 = vpop.permute.xlu0 %739
      %v742 = vmul.f32 %v307, %v725
      %v743 = vmul.f32 %v308, %v725
      %v744 = vmul.f32 %v309, %v730
      %v745 = vmul.f32 %v310, %v730
      %v746 = vmul.f32 %v311, %v735
      %v747 = vmul.f32 %v312, %v735
      %v748 = vmul.f32 %v313, %v740
      %v749 = vmul.f32 %v314, %v740
      %v750 = vadd.f32 %v709, %v742
      %v751 = vadd.f32 %v710, %v743
      %v752 = vadd.f32 %v711, %v744
      %v753 = vadd.f32 %v712, %v745
      %v754 = vadd.f32 %v713, %v746
      %v755 = vadd.f32 %v714, %v747
      %v756 = vadd.f32 %v715, %v748
      %v757 = vadd.f32 %v716, %v749
      %758 = vrot.lane.b32.xlu0 %v307, 127
      %v759 = vpop.permute.xlu0 %758
      %760 = vrot.lane.b32.xlu0 %v308, 127
      %v761 = vpop.permute.xlu0 %760
      %762 = vrot.lane.b32.xlu0 %v309, 127
      %v763 = vpop.permute.xlu0 %762
      %764 = vrot.lane.b32.xlu0 %v310, 127
      %v765 = vpop.permute.xlu0 %764
      %766 = vrot.lane.b32.xlu0 %v311, 127
      %v767 = vpop.permute.xlu0 %766
      %768 = vrot.lane.b32.xlu0 %v312, 127
      %v769 = vpop.permute.xlu0 %768
      %770 = vrot.lane.b32.xlu0 %v313, 127
      %v771 = vpop.permute.xlu0 %770
      %772 = vrot.lane.b32.xlu0 %v314, 127
      %v773 = vpop.permute.xlu0 %772
      %vm774 = vcmask 1039360
      %v775 = vsel %vm774, %v759, %v761
      %v776 = vsel %vm774, %v763, %v765
      %v777 = vsel %vm774, %v767, %v769
      %v778 = vsel %vm774, %v771, %v773
      %v791 = vsel %vm774, %v761, %v759
      %v792 = vsel %vm774, %v765, %v763
      %v793 = vsel %vm774, %v769, %v767
      %v794 = vsel %vm774, %v773, %v771
      %s795 = scalar_lea.vmem %s1, 10
      %v796 = vld [vmem:[%s795] sm:$0x3]
      %v798 = vlaneseq
      %v799 = vshrl.u32 %v798, 7
      %v800 = vsub.s32 0, %v799
      %v801 = vrot.slane %v796, %v800
      %v802 = vlaneseq
      %v803 = vshrl.u32 %v802, 7
      %v804 = vsub.s32 1, %v803
      %v805 = vrot.slane %v796, %v804
      %v808 = vmul.f32 %v775, %v801
      %v809 = vmul.f32 %v791, %v805
      %v810 = vmul.f32 %v776, %v801
      %v811 = vmul.f32 %v792, %v805
      %v812 = vmul.f32 %v777, %v801
      %v813 = vmul.f32 %v793, %v805
      %v814 = vmul.f32 %v778, %v801
      %v815 = vmul.f32 %v794, %v805
      %s816 = scalar_lea.vmem %s2, 160
      %v817 = vld [vmem:[%s816] sm:$0xff]
      %v818 = vld [vmem:[%s816 + $0x8] sm:$0xff]
      %v819 = vld [vmem:[%s816 + $0x10] sm:$0xff]
      %v820 = vld [vmem:[%s816 + $0x18] sm:$0xff]
      %822 = vset.pattern.permute.xlu0 0
      %823 = vperm.xlu0 %822, %v817
      %v824 = vpop.permute.xlu0 %823
      %827 = vset.pattern.permute.xlu0 0
      %828 = vperm.xlu0 %827, %v818
      %v829 = vpop.permute.xlu0 %828
      %832 = vset.pattern.permute.xlu0 0
      %833 = vperm.xlu0 %832, %v819
      %v834 = vpop.permute.xlu0 %833
      %837 = vset.pattern.permute.xlu0 0
      %838 = vperm.xlu0 %837, %v820
      %v839 = vpop.permute.xlu0 %838
      %v841 = vmul.f32 %v808, %v824
      %v842 = vmul.f32 %v809, %v824
      %v843 = vmul.f32 %v810, %v829
      %v844 = vmul.f32 %v811, %v829
      %v845 = vmul.f32 %v812, %v834
      %v846 = vmul.f32 %v813, %v834
      %v847 = vmul.f32 %v814, %v839
      %v848 = vmul.f32 %v815, %v839
      %v849 = vadd.f32 %v750, %v841
      %v850 = vadd.f32 %v751, %v842
      %v851 = vadd.f32 %v752, %v843
      %v852 = vadd.f32 %v753, %v844
      %v853 = vadd.f32 %v754, %v845
      %v854 = vadd.f32 %v755, %v846
      %v855 = vadd.f32 %v756, %v847
      %v856 = vadd.f32 %v757, %v848
      %857 = vrot.lane.b32.xlu0 %v307, 113
      %v858 = vpop.permute.xlu0 %857
      %859 = vrot.lane.b32.xlu0 %v308, 113
      %v860 = vpop.permute.xlu0 %859
      %861 = vrot.lane.b32.xlu0 %v309, 113
      %v862 = vpop.permute.xlu0 %861
      %863 = vrot.lane.b32.xlu0 %v310, 113
      %v864 = vpop.permute.xlu0 %863
      %865 = vrot.lane.b32.xlu0 %v311, 113
      %v866 = vpop.permute.xlu0 %865
      %867 = vrot.lane.b32.xlu0 %v312, 113
      %v868 = vpop.permute.xlu0 %867
      %869 = vrot.lane.b32.xlu0 %v313, 113
      %v870 = vpop.permute.xlu0 %869
      %871 = vrot.lane.b32.xlu0 %v314, 113
      %v872 = vpop.permute.xlu0 %871
      %vm873 = vcmask 924672
      %v874 = vsel %vm873, %v858, %v860
      %v875 = vsel %vm873, %v862, %v864
      %v876 = vsel %vm873, %v866, %v868
      %v877 = vsel %vm873, %v870, %v872
      %v890 = vsel %vm873, %v860, %v858
      %v891 = vsel %vm873, %v864, %v862
      %v892 = vsel %vm873, %v868, %v866
      %v893 = vsel %vm873, %v872, %v870
      %s894 = scalar_lea.vmem %s1, 12
      %v895 = vld [vmem:[%s894] sm:$0x3]
      %v897 = vlaneseq
      %v898 = vshrl.u32 %v897, 7
      %v899 = vsub.s32 0, %v898
      %v900 = vrot.slane %v895, %v899
      %v901 = vlaneseq
      %v902 = vshrl.u32 %v901, 7
      %v903 = vsub.s32 1, %v902
      %v904 = vrot.slane %v895, %v903
      %v907 = vmul.f32 %v874, %v900
      %v908 = vmul.f32 %v890, %v904
      %v909 = vmul.f32 %v875, %v900
      %v910 = vmul.f32 %v891, %v904
      %v911 = vmul.f32 %v876, %v900
      %v912 = vmul.f32 %v892, %v904
      %v913 = vmul.f32 %v877, %v900
      %v914 = vmul.f32 %v893, %v904
      %s915 = scalar_lea.vmem %s2, 192
      %v916 = vld [vmem:[%s915] sm:$0xff]
      %v917 = vld [vmem:[%s915 + $0x8] sm:$0xff]
      %v918 = vld [vmem:[%s915 + $0x10] sm:$0xff]
      %v919 = vld [vmem:[%s915 + $0x18] sm:$0xff]
      %921 = vset.pattern.permute.xlu0 0
      %922 = vperm.xlu0 %921, %v916
      %v923 = vpop.permute.xlu0 %922
      %926 = vset.pattern.permute.xlu0 0
      %927 = vperm.xlu0 %926, %v917
      %v928 = vpop.permute.xlu0 %927
      %931 = vset.pattern.permute.xlu0 0
      %932 = vperm.xlu0 %931, %v918
      %v933 = vpop.permute.xlu0 %932
      %936 = vset.pattern.permute.xlu0 0
      %937 = vperm.xlu0 %936, %v919
      %v938 = vpop.permute.xlu0 %937
      %v940 = vmul.f32 %v907, %v923
      %v941 = vmul.f32 %v908, %v923
      %v942 = vmul.f32 %v909, %v928
      %v943 = vmul.f32 %v910, %v928
      %v944 = vmul.f32 %v911, %v933
      %v945 = vmul.f32 %v912, %v933
      %v946 = vmul.f32 %v913, %v938
      %v947 = vmul.f32 %v914, %v938
      %v948 = vadd.f32 %v849, %v940
      %v949 = vadd.f32 %v850, %v941
      %v950 = vadd.f32 %v851, %v942
      %v951 = vadd.f32 %v852, %v943
      %v952 = vadd.f32 %v853, %v944
      %v953 = vadd.f32 %v854, %v945
      %v954 = vadd.f32 %v855, %v946
      %v955 = vadd.f32 %v856, %v947
      %956 = vrot.lane.b32.xlu0 %v307, 112
      %v957 = vpop.permute.xlu0 %956
      %958 = vrot.lane.b32.xlu0 %v308, 112
      %v959 = vpop.permute.xlu0 %958
      %960 = vrot.lane.b32.xlu0 %v309, 112
      %v961 = vpop.permute.xlu0 %960
      %962 = vrot.lane.b32.xlu0 %v310, 112
      %v963 = vpop.permute.xlu0 %962
      %964 = vrot.lane.b32.xlu0 %v311, 112
      %v965 = vpop.permute.xlu0 %964
      %966 = vrot.lane.b32.xlu0 %v312, 112
      %v967 = vpop.permute.xlu0 %966
      %968 = vrot.lane.b32.xlu0 %v313, 112
      %v969 = vpop.permute.xlu0 %968
      %970 = vrot.lane.b32.xlu0 %v314, 112
      %v971 = vpop.permute.xlu0 %970
      %vm972 = vcmask 916480
      %v973 = vsel %vm972, %v957, %v959
      %v974 = vsel %vm972, %v961, %v963
      %v975 = vsel %vm972, %v965, %v967
      %v976 = vsel %vm972, %v969, %v971
      %v989 = vsel %vm972, %v959, %v957
      %v990 = vsel %vm972, %v963, %v961
      %v991 = vsel %vm972, %v967, %v965
      %v992 = vsel %vm972, %v971, %v969
      %s993 = scalar_lea.vmem %s1, 14
      %v994 = vld [vmem:[%s993] sm:$0x3]
      %v996 = vlaneseq
      %v997 = vshrl.u32 %v996, 7
      %v998 = vsub.s32 0, %v997
      %v999 = vrot.slane %v994, %v998
      %v1000 = vlaneseq
      %v1001 = vshrl.u32 %v1000, 7
      %v1002 = vsub.s32 1, %v1001
      %v1003 = vrot.slane %v994, %v1002
      %v1006 = vmul.f32 %v973, %v999
      %v1007 = vmul.f32 %v989, %v1003
      %v1008 = vmul.f32 %v974, %v999
      %v1009 = vmul.f32 %v990, %v1003
      %v1010 = vmul.f32 %v975, %v999
      %v1011 = vmul.f32 %v991, %v1003
      %v1012 = vmul.f32 %v976, %v999
      %v1013 = vmul.f32 %v992, %v1003
      %s1014 = scalar_lea.vmem %s2, 224
      %v1015 = vld [vmem:[%s1014] sm:$0xff]
      %v1016 = vld [vmem:[%s1014 + $0x8] sm:$0xff]
      %v1017 = vld [vmem:[%s1014 + $0x10] sm:$0xff]
      %v1018 = vld [vmem:[%s1014 + $0x18] sm:$0xff]
      %1020 = vset.pattern.permute.xlu0 0
      %1021 = vperm.xlu0 %1020, %v1015
      %v1022 = vpop.permute.xlu0 %1021
      %1025 = vset.pattern.permute.xlu0 0
      %1026 = vperm.xlu0 %1025, %v1016
      %v1027 = vpop.permute.xlu0 %1026
      %1030 = vset.pattern.permute.xlu0 0
      %1031 = vperm.xlu0 %1030, %v1017
      %v1032 = vpop.permute.xlu0 %1031
      %1035 = vset.pattern.permute.xlu0 0
      %1036 = vperm.xlu0 %1035, %v1018
      %v1037 = vpop.permute.xlu0 %1036
      %v1039 = vmul.f32 %v1006, %v1022
      %v1040 = vmul.f32 %v1007, %v1022
      %v1041 = vmul.f32 %v1008, %v1027
      %v1042 = vmul.f32 %v1009, %v1027
      %v1043 = vmul.f32 %v1010, %v1032
      %v1044 = vmul.f32 %v1011, %v1032
      %v1045 = vmul.f32 %v1012, %v1037
      %v1046 = vmul.f32 %v1013, %v1037
      %v1047 = vadd.f32 %v948, %v1039
      %v1048 = vadd.f32 %v949, %v1040
      %v1049 = vadd.f32 %v950, %v1041
      %v1050 = vadd.f32 %v951, %v1042
      %v1051 = vadd.f32 %v952, %v1043
      %v1052 = vadd.f32 %v953, %v1044
      %v1053 = vadd.f32 %v954, %v1045
      %v1054 = vadd.f32 %v955, %v1046
      %1055 = vrot.lane.b32.xlu0 %v307, 111
      %v1056 = vpop.permute.xlu0 %1055
      %1057 = vrot.lane.b32.xlu0 %v308, 111
      %v1058 = vpop.permute.xlu0 %1057
      %1059 = vrot.lane.b32.xlu0 %v309, 111
      %v1060 = vpop.permute.xlu0 %1059
      %1061 = vrot.lane.b32.xlu0 %v310, 111
      %v1062 = vpop.permute.xlu0 %1061
      %1063 = vrot.lane.b32.xlu0 %v311, 111
      %v1064 = vpop.permute.xlu0 %1063
      %1065 = vrot.lane.b32.xlu0 %v312, 111
      %v1066 = vpop.permute.xlu0 %1065
      %1067 = vrot.lane.b32.xlu0 %v313, 111
      %v1068 = vpop.permute.xlu0 %1067
      %1069 = vrot.lane.b32.xlu0 %v314, 111
      %v1070 = vpop.permute.xlu0 %1069
      %vm1071 = vcmask 908288
      %v1072 = vsel %vm1071, %v1056, %v1058
      %v1073 = vsel %vm1071, %v1060, %v1062
      %v1074 = vsel %vm1071, %v1064, %v1066
      %v1075 = vsel %vm1071, %v1068, %v1070
      %v1088 = vsel %vm1071, %v1058, %v1056
      %v1089 = vsel %vm1071, %v1062, %v1060
      %v1090 = vsel %vm1071, %v1066, %v1064
      %v1091 = vsel %vm1071, %v1070, %v1068
      %s1092 = scalar_lea.vmem %s1, 16
      %v1093 = vld [vmem:[%s1092] sm:$0x3]
      %v1095 = vlaneseq
      %v1096 = vshrl.u32 %v1095, 7
      %v1097 = vsub.s32 0, %v1096
      %v1098 = vrot.slane %v1093, %v1097
      %v1099 = vlaneseq
      %v1100 = vshrl.u32 %v1099, 7
      %v1101 = vsub.s32 1, %v1100
      %v1102 = vrot.slane %v1093, %v1101
      %v1105 = vmul.f32 %v1072, %v1098
      %v1106 = vmul.f32 %v1088, %v1102
      %v1107 = vmul.f32 %v1073, %v1098
      %v1108 = vmul.f32 %v1089, %v1102
      %v1109 = vmul.f32 %v1074, %v1098
      %v1110 = vmul.f32 %v1090, %v1102
      %v1111 = vmul.f32 %v1075, %v1098
      %v1112 = vmul.f32 %v1091, %v1102
      %s1113 = scalar_lea.vmem %s2, 256
      %v1114 = vld [vmem:[%s1113] sm:$0xff]
      %v1115 = vld [vmem:[%s1113 + $0x8] sm:$0xff]
      %v1116 = vld [vmem:[%s1113 + $0x10] sm:$0xff]
      %v1117 = vld [vmem:[%s1113 + $0x18] sm:$0xff]
      %1119 = vset.pattern.permute.xlu0 0
      %1120 = vperm.xlu0 %1119, %v1114
      %v1121 = vpop.permute.xlu0 %1120
      %1124 = vset.pattern.permute.xlu0 0
      %1125 = vperm.xlu0 %1124, %v1115
      %v1126 = vpop.permute.xlu0 %1125
      %1129 = vset.pattern.permute.xlu0 0
      %1130 = vperm.xlu0 %1129, %v1116
      %v1131 = vpop.permute.xlu0 %1130
      %1134 = vset.pattern.permute.xlu0 0
      %1135 = vperm.xlu0 %1134, %v1117
      %v1136 = vpop.permute.xlu0 %1135
      %v1138 = vmul.f32 %v1105, %v1121
      %v1139 = vmul.f32 %v1106, %v1121
      %v1140 = vmul.f32 %v1107, %v1126
      %v1141 = vmul.f32 %v1108, %v1126
      %v1142 = vmul.f32 %v1109, %v1131
      %v1143 = vmul.f32 %v1110, %v1131
      %v1144 = vmul.f32 %v1111, %v1136
      %v1145 = vmul.f32 %v1112, %v1136
      %v1146 = vadd.f32 %v1047, %v1138
      %v1147 = vadd.f32 %v1048, %v1139
      %v1148 = vadd.f32 %v1049, %v1140
      %v1149 = vadd.f32 %v1050, %v1141
      %v1150 = vadd.f32 %v1051, %v1142
      %v1151 = vadd.f32 %v1052, %v1143
      %v1152 = vadd.f32 %v1053, %v1144
      %v1153 = vadd.f32 %v1054, %v1145
      %v1154 = vld [vmem:[%s3] sm:$0xf]
      %v1155 = vld [vmem:[%s3 + $0x4] sm:$0xf]
      %v1156 = vld [vmem:[%s3 + $0x8] sm:$0xf]
      %v1157 = vld [vmem:[%s3 + $0xc] sm:$0xf]
      %v1158 = vpack.c.bf16 %v1148, %v1146
      %v1159 = vpack.c.bf16 %v1149, %v1147
      %v1160 = vpack.c.bf16 %v1152, %v1150
      %v1161 = vpack.c.bf16 %v1153, %v1151
      %v1162 = vld [vmem:[%s4] sm:$0xff]
      %v1163 = vld [vmem:[%s4 + $0x8] sm:$0xff]
      %v1164 = vld [vmem:[%s4 + $0x10] sm:$0xff]
      %v1165 = vld [vmem:[%s4 + $0x18] sm:$0xff]
      %1167 = vset.pattern.permute.xlu0 0
      %1168 = vperm.xlu0 %1167, %v1162
      %v1169 = vpop.permute.xlu0 %1168
      %1172 = vset.pattern.permute.xlu0 0
      %1173 = vperm.xlu0 %1172, %v1163
      %v1174 = vpop.permute.xlu0 %1173
      %1177 = vset.pattern.permute.xlu0 0
      %1178 = vperm.xlu0 %1177, %v1164
      %v1179 = vpop.permute.xlu0 %1178
      %1182 = vset.pattern.permute.xlu0 0
      %1183 = vperm.xlu0 %1182, %v1165
      %v1184 = vpop.permute.xlu0 %1183
      %v1190 = vunpack.c.l.b16 %v1154
      %v1191 = vunpack.c.l.b16 %v1155
      %v1192 = vunpack.c.l.b16 %v1156
      %v1193 = vunpack.c.l.b16 %v1157
      %v1194 = vpack.c.b16 %v1191, %v1190
      %v1195 = vpack.c.b16 %v1193, %v1192
      %vm1196 = vcmask 261120
      %v1198 = vsel %vm1196, %v1194, 0
      %v1201 = vsel %vm1196, %v1195, 0
      %1203 = vmatprep.subr.bf16.mxu0 %v1159
      %1204 = vmatpush1.bf16.msra.mxu0 %v1158
      %1205 = vmatprep.subr.bf16.mxu0 %v1161
      %1206 = vmatpush1.bf16.msra.mxu0 %v1160
      %1207 = vmatprep.subr.bf16.mxu0 0
      %1208 = vmatpush1.bf16.msra.mxu0 0
      %1209 = vmatprep.subr.bf16.mxu0 0
      %1210 = vmatpush1.bf16.msra.mxu0 0
      %1211 = vmatprep.subr.bf16.mxu0 0
      %1212 = vmatpush1.bf16.msra.mxu0 0
      %1213 = vmatprep.subr.bf16.mxu0 0
      %1214 = vmatpush1.bf16.msra.mxu0 0
      %1215 = vmatprep.subr.bf16.mxu0 0
      %1216 = vmatpush1.bf16.msra.mxu0 0
      %1217 = vmatprep.subr.bf16.mxu0 0
      %1218 = vmatpush1.bf16.msra.mxu0 0
      %1219 = vmatprep.subr.bf16.mxu0 0
      %1220 = vmatpush1.bf16.msra.mxu0 0
      %1221 = vmatprep.subr.bf16.mxu0 0
      %1222 = vmatpush1.bf16.msra.mxu0 0
      %1223 = vmatprep.subr.bf16.mxu0 0
      %1224 = vmatpush1.bf16.msra.mxu0 0
      %1225 = vmatprep.subr.bf16.mxu0 0
      %1226 = vmatpush1.bf16.msra.mxu0 0
      %1227 = vmatprep.subr.bf16.mxu0 0
      %1228 = vmatpush1.bf16.msra.mxu0 0
      %1229 = vmatprep.subr.bf16.mxu0 0
      %1230 = vmatpush1.bf16.msra.mxu0 0
      %1231 = vmatprep.subr.bf16.mxu0 0
      %1232 = vmatpush1.bf16.msra.mxu0 0
      %1233 = vmatprep.subr.bf16.mxu0 0
      %1234 = vmatpush1.bf16.msra.mxu0 0
      %1235 = vmatprep.mubr.bf16.mxu0 0
      %1236 = vmatmul.mubr.bf16.gmra.mrb[0].mxu0 %v1198
      %v1237 = vpop.f32.mrb[0].mxu0
      %v1238 = vadd.f32 %v1169, %v1237
      %v1239 = vpop.f32.mrb[0].mxu0
      %v1240 = vadd.f32 %v1169, %v1239
      %v1241 = vpop.f32.mrb[0].mxu0
      %v1242 = vadd.f32 %v1174, %v1241
      %v1243 = vpop.f32.mrb[0].mxu0
      %v1244 = vadd.f32 %v1174, %v1243
      %1245 = vmatprep.mubr.bf16.mxu0 0
      %1246 = vmatmul.mubr.bf16.gmra.mrb[0].mxu0 %v1201
      %v1247 = vpop.f32.mrb[0].mxu0
      %v1248 = vadd.f32 %v1179, %v1247
      %v1249 = vpop.f32.mrb[0].mxu0
      %v1250 = vadd.f32 %v1179, %v1249
      %v1251 = vpop.f32.mrb[0].mxu0
      %v1252 = vadd.f32 %v1184, %v1251
      %v1253 = vpop.f32.mrb[0].mxu0
      %v1254 = vadd.f32 %v1184, %v1253
      %1255 = vdwg.mxu0
      %v1256 = vmax.f32 %v1238, 0.0
      %v1257 = vmax.f32 %v1240, 0.0
      %v1258 = vmax.f32 %v1242, 0.0
      %v1259 = vmax.f32 %v1244, 0.0
      %v1260 = vmax.f32 %v1248, 0.0
      %v1261 = vmax.f32 %v1250, 0.0
      %v1262 = vmax.f32 %v1252, 0.0
      %v1263 = vmax.f32 %v1254, 0.0
      %1268 = vrot.lane.b32.xlu0 %v1257, 17
      %v1269 = vpop.permute.xlu0 %1268
      %1270 = vrot.lane.b32.xlu0 %v1259, 17
      %v1271 = vpop.permute.xlu0 %1270
      %1272 = vrot.lane.b32.xlu0 %v1261, 17
      %v1273 = vpop.permute.xlu0 %1272
      %1274 = vrot.lane.b32.xlu0 %v1263, 17
      %v1275 = vpop.permute.xlu0 %1274
      %1284 = vrot.lane.b32.xlu0 %v1256, 17
      %v1285 = vpop.permute.xlu0 %1284
      %1286 = vrot.lane.b32.xlu0 %v1258, 17
      %v1287 = vpop.permute.xlu0 %1286
      %1288 = vrot.lane.b32.xlu0 %v1260, 17
      %v1289 = vpop.permute.xlu0 %1288
      %1290 = vrot.lane.b32.xlu0 %v1262, 17
      %v1291 = vpop.permute.xlu0 %1290
      %v1292 = vsel %vm343, %v1285, %v1269
      %v1293 = vsel %vm343, %v1287, %v1271
      %v1294 = vsel %vm343, %v1289, %v1273
      %v1295 = vsel %vm343, %v1291, %v1275
      %v1304 = vsel %vm343, %v1269, %v1285
      %v1305 = vsel %vm343, %v1271, %v1287
      %v1306 = vsel %vm343, %v1273, %v1289
      %v1307 = vsel %vm343, %v1275, %v1291
      %v1308 = vmul.f32 %v1304, %v365
      %v1309 = vmul.f32 %v1292, %v369
      %v1310 = vmul.f32 %v1305, %v365
      %v1311 = vmul.f32 %v1293, %v369
      %v1312 = vmul.f32 %v1306, %v365
      %v1313 = vmul.f32 %v1294, %v369
      %v1314 = vmul.f32 %v1307, %v365
      %v1315 = vmul.f32 %v1295, %v369
      %v1316 = vld [vmem:[%s5] sm:$0xff]
      %v1317 = vld [vmem:[%s5 + $0x8] sm:$0xff]
      %v1318 = vld [vmem:[%s5 + $0x10] sm:$0xff]
      %v1319 = vld [vmem:[%s5 + $0x18] sm:$0xff]
      %1321 = vset.pattern.permute.xlu0 0
      %1322 = vperm.xlu0 %1321, %v1316
      %v1323 = vpop.permute.xlu0 %1322
      %1326 = vset.pattern.permute.xlu0 0
      %1327 = vperm.xlu0 %1326, %v1317
      %v1328 = vpop.permute.xlu0 %1327
      %1331 = vset.pattern.permute.xlu0 0
      %1332 = vperm.xlu0 %1331, %v1318
      %v1333 = vpop.permute.xlu0 %1332
      %1336 = vset.pattern.permute.xlu0 0
      %1337 = vperm.xlu0 %1336, %v1319
      %v1338 = vpop.permute.xlu0 %1337
      %v1340 = vmul.f32 %v1308, %v1323
      %v1341 = vmul.f32 %v1309, %v1323
      %v1342 = vmul.f32 %v1310, %v1328
      %v1343 = vmul.f32 %v1311, %v1328
      %v1344 = vmul.f32 %v1312, %v1333
      %v1345 = vmul.f32 %v1313, %v1333
      %v1346 = vmul.f32 %v1314, %v1338
      %v1347 = vmul.f32 %v1315, %v1338
      %v1348 = vadd.f32 %v1340, 0.0
      %v1349 = vadd.f32 %v1341, 0.0
      %v1350 = vadd.f32 %v1342, 0.0
      %v1351 = vadd.f32 %v1343, 0.0
      %v1352 = vadd.f32 %v1344, 0.0
      %v1353 = vadd.f32 %v1345, 0.0
      %v1354 = vadd.f32 %v1346, 0.0
      %v1355 = vadd.f32 %v1347, 0.0
      %1356 = vrot.lane.b32.xlu0 %v1257, 16
      %v1357 = vpop.permute.xlu0 %1356
      %1358 = vrot.lane.b32.xlu0 %v1259, 16
      %v1359 = vpop.permute.xlu0 %1358
      %1360 = vrot.lane.b32.xlu0 %v1261, 16
      %v1361 = vpop.permute.xlu0 %1360
      %1362 = vrot.lane.b32.xlu0 %v1263, 16
      %v1363 = vpop.permute.xlu0 %1362
      %1368 = vrot.lane.b32.xlu0 %v1256, 16
      %v1369 = vpop.permute.xlu0 %1368
      %1370 = vrot.lane.b32.xlu0 %v1258, 16
      %v1371 = vpop.permute.xlu0 %1370
      %1372 = vrot.lane.b32.xlu0 %v1260, 16
      %v1373 = vpop.permute.xlu0 %1372
      %1374 = vrot.lane.b32.xlu0 %v1262, 16
      %v1375 = vpop.permute.xlu0 %1374
      %v1376 = vsel %vm440, %v1369, %v1357
      %v1377 = vsel %vm440, %v1371, %v1359
      %v1378 = vsel %vm440, %v1373, %v1361
      %v1379 = vsel %vm440, %v1375, %v1363
      %v1388 = vsel %vm440, %v1357, %v1369
      %v1389 = vsel %vm440, %v1359, %v1371
      %v1390 = vsel %vm440, %v1361, %v1373
      %v1391 = vsel %vm440, %v1363, %v1375
      %v1392 = vmul.f32 %v1388, %v463
      %v1393 = vmul.f32 %v1376, %v467
      %v1394 = vmul.f32 %v1389, %v463
      %v1395 = vmul.f32 %v1377, %v467
      %v1396 = vmul.f32 %v1390, %v463
      %v1397 = vmul.f32 %v1378, %v467
      %v1398 = vmul.f32 %v1391, %v463
      %v1399 = vmul.f32 %v1379, %v467
      %s1400 = scalar_lea.vmem %s5, 32
      %v1401 = vld [vmem:[%s1400] sm:$0xff]
      %v1402 = vld [vmem:[%s1400 + $0x8] sm:$0xff]
      %v1403 = vld [vmem:[%s1400 + $0x10] sm:$0xff]
      %v1404 = vld [vmem:[%s1400 + $0x18] sm:$0xff]
      %1406 = vset.pattern.permute.xlu0 0
      %1407 = vperm.xlu0 %1406, %v1401
      %v1408 = vpop.permute.xlu0 %1407
      %1411 = vset.pattern.permute.xlu0 0
      %1412 = vperm.xlu0 %1411, %v1402
      %v1413 = vpop.permute.xlu0 %1412
      %1416 = vset.pattern.permute.xlu0 0
      %1417 = vperm.xlu0 %1416, %v1403
      %v1418 = vpop.permute.xlu0 %1417
      %1421 = vset.pattern.permute.xlu0 0
      %1422 = vperm.xlu0 %1421, %v1404
      %v1423 = vpop.permute.xlu0 %1422
      %v1425 = vmul.f32 %v1392, %v1408
      %v1426 = vmul.f32 %v1393, %v1408
      %v1427 = vmul.f32 %v1394, %v1413
      %v1428 = vmul.f32 %v1395, %v1413
      %v1429 = vmul.f32 %v1396, %v1418
      %v1430 = vmul.f32 %v1397, %v1418
      %v1431 = vmul.f32 %v1398, %v1423
      %v1432 = vmul.f32 %v1399, %v1423
      %v1433 = vadd.f32 %v1348, %v1425
      %v1434 = vadd.f32 %v1349, %v1426
      %v1435 = vadd.f32 %v1350, %v1427
      %v1436 = vadd.f32 %v1351, %v1428
      %v1437 = vadd.f32 %v1352, %v1429
      %v1438 = vadd.f32 %v1353, %v1430
      %v1439 = vadd.f32 %v1354, %v1431
      %v1440 = vadd.f32 %v1355, %v1432
      %1441 = vrot.lane.b32.xlu0 %v1257, 15
      %v1442 = vpop.permute.xlu0 %1441
      %1443 = vrot.lane.b32.xlu0 %v1259, 15
      %v1444 = vpop.permute.xlu0 %1443
      %1445 = vrot.lane.b32.xlu0 %v1261, 15
      %v1446 = vpop.permute.xlu0 %1445
      %1447 = vrot.lane.b32.xlu0 %v1263, 15
      %v1448 = vpop.permute.xlu0 %1447
      %1453 = vrot.lane.b32.xlu0 %v1256, 15
      %v1454 = vpop.permute.xlu0 %1453
      %1455 = vrot.lane.b32.xlu0 %v1258, 15
      %v1456 = vpop.permute.xlu0 %1455
      %1457 = vrot.lane.b32.xlu0 %v1260, 15
      %v1458 = vpop.permute.xlu0 %1457
      %1459 = vrot.lane.b32.xlu0 %v1262, 15
      %v1460 = vpop.permute.xlu0 %1459
      %v1461 = vsel %vm539, %v1454, %v1442
      %v1462 = vsel %vm539, %v1456, %v1444
      %v1463 = vsel %vm539, %v1458, %v1446
      %v1464 = vsel %vm539, %v1460, %v1448
      %v1473 = vsel %vm539, %v1442, %v1454
      %v1474 = vsel %vm539, %v1444, %v1456
      %v1475 = vsel %vm539, %v1446, %v1458
      %v1476 = vsel %vm539, %v1448, %v1460
      %v1477 = vmul.f32 %v1473, %v562
      %v1478 = vmul.f32 %v1461, %v566
      %v1479 = vmul.f32 %v1474, %v562
      %v1480 = vmul.f32 %v1462, %v566
      %v1481 = vmul.f32 %v1475, %v562
      %v1482 = vmul.f32 %v1463, %v566
      %v1483 = vmul.f32 %v1476, %v562
      %v1484 = vmul.f32 %v1464, %v566
      %s1485 = scalar_lea.vmem %s5, 64
      %v1486 = vld [vmem:[%s1485] sm:$0xff]
      %v1487 = vld [vmem:[%s1485 + $0x8] sm:$0xff]
      %v1488 = vld [vmem:[%s1485 + $0x10] sm:$0xff]
      %v1489 = vld [vmem:[%s1485 + $0x18] sm:$0xff]
      %1491 = vset.pattern.permute.xlu0 0
      %1492 = vperm.xlu0 %1491, %v1486
      %v1493 = vpop.permute.xlu0 %1492
      %1496 = vset.pattern.permute.xlu0 0
      %1497 = vperm.xlu0 %1496, %v1487
      %v1498 = vpop.permute.xlu0 %1497
      %1501 = vset.pattern.permute.xlu0 0
      %1502 = vperm.xlu0 %1501, %v1488
      %v1503 = vpop.permute.xlu0 %1502
      %1506 = vset.pattern.permute.xlu0 0
      %1507 = vperm.xlu0 %1506, %v1489
      %v1508 = vpop.permute.xlu0 %1507
      %v1510 = vmul.f32 %v1477, %v1493
      %v1511 = vmul.f32 %v1478, %v1493
      %v1512 = vmul.f32 %v1479, %v1498
      %v1513 = vmul.f32 %v1480, %v1498
      %v1514 = vmul.f32 %v1481, %v1503
      %v1515 = vmul.f32 %v1482, %v1503
      %v1516 = vmul.f32 %v1483, %v1508
      %v1517 = vmul.f32 %v1484, %v1508
      %v1518 = vadd.f32 %v1433, %v1510
      %v1519 = vadd.f32 %v1434, %v1511
      %v1520 = vadd.f32 %v1435, %v1512
      %v1521 = vadd.f32 %v1436, %v1513
      %v1522 = vadd.f32 %v1437, %v1514
      %v1523 = vadd.f32 %v1438, %v1515
      %v1524 = vadd.f32 %v1439, %v1516
      %v1525 = vadd.f32 %v1440, %v1517
      %1526 = vrot.lane.b32.xlu0 %v1257, 1
      %v1527 = vpop.permute.xlu0 %1526
      %1528 = vrot.lane.b32.xlu0 %v1259, 1
      %v1529 = vpop.permute.xlu0 %1528
      %1530 = vrot.lane.b32.xlu0 %v1261, 1
      %v1531 = vpop.permute.xlu0 %1530
      %1532 = vrot.lane.b32.xlu0 %v1263, 1
      %v1533 = vpop.permute.xlu0 %1532
      %1538 = vrot.lane.b32.xlu0 %v1256, 1
      %v1539 = vpop.permute.xlu0 %1538
      %1540 = vrot.lane.b32.xlu0 %v1258, 1
      %v1541 = vpop.permute.xlu0 %1540
      %1542 = vrot.lane.b32.xlu0 %v1260, 1
      %v1543 = vpop.permute.xlu0 %1542
      %1544 = vrot.lane.b32.xlu0 %v1262, 1
      %v1545 = vpop.permute.xlu0 %1544
      %v1546 = vsel %vm638, %v1539, %v1527
      %v1547 = vsel %vm638, %v1541, %v1529
      %v1548 = vsel %vm638, %v1543, %v1531
      %v1549 = vsel %vm638, %v1545, %v1533
      %v1558 = vsel %vm638, %v1527, %v1539
      %v1559 = vsel %vm638, %v1529, %v1541
      %v1560 = vsel %vm638, %v1531, %v1543
      %v1561 = vsel %vm638, %v1533, %v1545
      %v1562 = vmul.f32 %v1558, %v661
      %v1563 = vmul.f32 %v1546, %v665
      %v1564 = vmul.f32 %v1559, %v661
      %v1565 = vmul.f32 %v1547, %v665
      %v1566 = vmul.f32 %v1560, %v661
      %v1567 = vmul.f32 %v1548, %v665
      %v1568 = vmul.f32 %v1561, %v661
      %v1569 = vmul.f32 %v1549, %v665
      %s1570 = scalar_lea.vmem %s5, 96
      %v1571 = vld [vmem:[%s1570] sm:$0xff]
      %v1572 = vld [vmem:[%s1570 + $0x8] sm:$0xff]
      %v1573 = vld [vmem:[%s1570 + $0x10] sm:$0xff]
      %v1574 = vld [vmem:[%s1570 + $0x18] sm:$0xff]
      %1576 = vset.pattern.permute.xlu0 0
      %1577 = vperm.xlu0 %1576, %v1571
      %v1578 = vpop.permute.xlu0 %1577
      %1581 = vset.pattern.permute.xlu0 0
      %1582 = vperm.xlu0 %1581, %v1572
      %v1583 = vpop.permute.xlu0 %1582
      %1586 = vset.pattern.permute.xlu0 0
      %1587 = vperm.xlu0 %1586, %v1573
      %v1588 = vpop.permute.xlu0 %1587
      %1591 = vset.pattern.permute.xlu0 0
      %1592 = vperm.xlu0 %1591, %v1574
      %v1593 = vpop.permute.xlu0 %1592
      %v1595 = vmul.f32 %v1562, %v1578
      %v1596 = vmul.f32 %v1563, %v1578
      %v1597 = vmul.f32 %v1564, %v1583
      %v1598 = vmul.f32 %v1565, %v1583
      %v1599 = vmul.f32 %v1566, %v1588
      %v1600 = vmul.f32 %v1567, %v1588
      %v1601 = vmul.f32 %v1568, %v1593
      %v1602 = vmul.f32 %v1569, %v1593
      %v1603 = vadd.f32 %v1518, %v1595
      %v1604 = vadd.f32 %v1519, %v1596
      %v1605 = vadd.f32 %v1520, %v1597
      %v1606 = vadd.f32 %v1521, %v1598
      %v1607 = vadd.f32 %v1522, %v1599
      %v1608 = vadd.f32 %v1523, %v1600
      %v1609 = vadd.f32 %v1524, %v1601
      %v1610 = vadd.f32 %v1525, %v1602
      %s1611 = scalar_lea.vmem %s5, 128
      %v1612 = vld [vmem:[%s1611] sm:$0xff]
      %v1613 = vld [vmem:[%s1611 + $0x8] sm:$0xff]
      %v1614 = vld [vmem:[%s1611 + $0x10] sm:$0xff]
      %v1615 = vld [vmem:[%s1611 + $0x18] sm:$0xff]
      %1617 = vset.pattern.permute.xlu0 0
      %1618 = vperm.xlu0 %1617, %v1612
      %v1619 = vpop.permute.xlu0 %1618
      %1622 = vset.pattern.permute.xlu0 0
      %1623 = vperm.xlu0 %1622, %v1613
      %v1624 = vpop.permute.xlu0 %1623
      %1627 = vset.pattern.permute.xlu0 0
      %1628 = vperm.xlu0 %1627, %v1614
      %v1629 = vpop.permute.xlu0 %1628
      %1632 = vset.pattern.permute.xlu0 0
      %1633 = vperm.xlu0 %1632, %v1615
      %v1634 = vpop.permute.xlu0 %1633
      %v1636 = vmul.f32 %v1256, %v1619
      %v1637 = vmul.f32 %v1257, %v1619
      %v1638 = vmul.f32 %v1258, %v1624
      %v1639 = vmul.f32 %v1259, %v1624
      %v1640 = vmul.f32 %v1260, %v1629
      %v1641 = vmul.f32 %v1261, %v1629
      %v1642 = vmul.f32 %v1262, %v1634
      %v1643 = vmul.f32 %v1263, %v1634
      %v1644 = vadd.f32 %v1603, %v1636
      %v1645 = vadd.f32 %v1604, %v1637
      %v1646 = vadd.f32 %v1605, %v1638
      %v1647 = vadd.f32 %v1606, %v1639
      %v1648 = vadd.f32 %v1607, %v1640
      %v1649 = vadd.f32 %v1608, %v1641
      %v1650 = vadd.f32 %v1609, %v1642
      %v1651 = vadd.f32 %v1610, %v1643
      %1652 = vrot.lane.b32.xlu0 %v1256, 127
      %v1653 = vpop.permute.xlu0 %1652
      %1654 = vrot.lane.b32.xlu0 %v1257, 127
      %v1655 = vpop.permute.xlu0 %1654
      %1656 = vrot.lane.b32.xlu0 %v1258, 127
      %v1657 = vpop.permute.xlu0 %1656
      %1658 = vrot.lane.b32.xlu0 %v1259, 127
      %v1659 = vpop.permute.xlu0 %1658
      %1660 = vrot.lane.b32.xlu0 %v1260, 127
      %v1661 = vpop.permute.xlu0 %1660
      %1662 = vrot.lane.b32.xlu0 %v1261, 127
      %v1663 = vpop.permute.xlu0 %1662
      %1664 = vrot.lane.b32.xlu0 %v1262, 127
      %v1665 = vpop.permute.xlu0 %1664
      %1666 = vrot.lane.b32.xlu0 %v1263, 127
      %v1667 = vpop.permute.xlu0 %1666
      %v1668 = vsel %vm774, %v1653, %v1655
      %v1669 = vsel %vm774, %v1657, %v1659
      %v1670 = vsel %vm774, %v1661, %v1663
      %v1671 = vsel %vm774, %v1665, %v1667
      %v1684 = vsel %vm774, %v1655, %v1653
      %v1685 = vsel %vm774, %v1659, %v1657
      %v1686 = vsel %vm774, %v1663, %v1661
      %v1687 = vsel %vm774, %v1667, %v1665
      %v1688 = vmul.f32 %v1668, %v801
      %v1689 = vmul.f32 %v1684, %v805
      %v1690 = vmul.f32 %v1669, %v801
      %v1691 = vmul.f32 %v1685, %v805
      %v1692 = vmul.f32 %v1670, %v801
      %v1693 = vmul.f32 %v1686, %v805
      %v1694 = vmul.f32 %v1671, %v801
      %v1695 = vmul.f32 %v1687, %v805
      %s1696 = scalar_lea.vmem %s5, 160
      %v1697 = vld [vmem:[%s1696] sm:$0xff]
      %v1698 = vld [vmem:[%s1696 + $0x8] sm:$0xff]
      %v1699 = vld [vmem:[%s1696 + $0x10] sm:$0xff]
      %v1700 = vld [vmem:[%s1696 + $0x18] sm:$0xff]
      %1702 = vset.pattern.permute.xlu0 0
      %1703 = vperm.xlu0 %1702, %v1697
      %v1704 = vpop.permute.xlu0 %1703
      %1707 = vset.pattern.permute.xlu0 0
      %1708 = vperm.xlu0 %1707, %v1698
      %v1709 = vpop.permute.xlu0 %1708
      %1712 = vset.pattern.permute.xlu0 0
      %1713 = vperm.xlu0 %1712, %v1699
      %v1714 = vpop.permute.xlu0 %1713
      %1717 = vset.pattern.permute.xlu0 0
      %1718 = vperm.xlu0 %1717, %v1700
      %v1719 = vpop.permute.xlu0 %1718
      %v1721 = vmul.f32 %v1688, %v1704
      %v1722 = vmul.f32 %v1689, %v1704
      %v1723 = vmul.f32 %v1690, %v1709
      %v1724 = vmul.f32 %v1691, %v1709
      %v1725 = vmul.f32 %v1692, %v1714
      %v1726 = vmul.f32 %v1693, %v1714
      %v1727 = vmul.f32 %v1694, %v1719
      %v1728 = vmul.f32 %v1695, %v1719
      %v1729 = vadd.f32 %v1644, %v1721
      %v1730 = vadd.f32 %v1645, %v1722
      %v1731 = vadd.f32 %v1646, %v1723
      %v1732 = vadd.f32 %v1647, %v1724
      %v1733 = vadd.f32 %v1648, %v1725
      %v1734 = vadd.f32 %v1649, %v1726
      %v1735 = vadd.f32 %v1650, %v1727
      %v1736 = vadd.f32 %v1651, %v1728
      %1737 = vrot.lane.b32.xlu0 %v1256, 113
      %v1738 = vpop.permute.xlu0 %1737
      %1739 = vrot.lane.b32.xlu0 %v1257, 113
      %v1740 = vpop.permute.xlu0 %1739
      %1741 = vrot.lane.b32.xlu0 %v1258, 113
      %v1742 = vpop.permute.xlu0 %1741
      %1743 = vrot.lane.b32.xlu0 %v1259, 113
      %v1744 = vpop.permute.xlu0 %1743
      %1745 = vrot.lane.b32.xlu0 %v1260, 113
      %v1746 = vpop.permute.xlu0 %1745
      %1747 = vrot.lane.b32.xlu0 %v1261, 113
      %v1748 = vpop.permute.xlu0 %1747
      %1749 = vrot.lane.b32.xlu0 %v1262, 113
      %v1750 = vpop.permute.xlu0 %1749
      %1751 = vrot.lane.b32.xlu0 %v1263, 113
      %v1752 = vpop.permute.xlu0 %1751
      %v1753 = vsel %vm873, %v1738, %v1740
      %v1754 = vsel %vm873, %v1742, %v1744
      %v1755 = vsel %vm873, %v1746, %v1748
      %v1756 = vsel %vm873, %v1750, %v1752
      %v1769 = vsel %vm873, %v1740, %v1738
      %v1770 = vsel %vm873, %v1744, %v1742
      %v1771 = vsel %vm873, %v1748, %v1746
      %v1772 = vsel %vm873, %v1752, %v1750
      %v1773 = vmul.f32 %v1753, %v900
      %v1774 = vmul.f32 %v1769, %v904
      %v1775 = vmul.f32 %v1754, %v900
      %v1776 = vmul.f32 %v1770, %v904
      %v1777 = vmul.f32 %v1755, %v900
      %v1778 = vmul.f32 %v1771, %v904
      %v1779 = vmul.f32 %v1756, %v900
      %v1780 = vmul.f32 %v1772, %v904
      %s1781 = scalar_lea.vmem %s5, 192
      %v1782 = vld [vmem:[%s1781] sm:$0xff]
      %v1783 = vld [vmem:[%s1781 + $0x8] sm:$0xff]
      %v1784 = vld [vmem:[%s1781 + $0x10] sm:$0xff]
      %v1785 = vld [vmem:[%s1781 + $0x18] sm:$0xff]
      %1787 = vset.pattern.permute.xlu0 0
      %1788 = vperm.xlu0 %1787, %v1782
      %v1789 = vpop.permute.xlu0 %1788
      %1792 = vset.pattern.permute.xlu0 0
      %1793 = vperm.xlu0 %1792, %v1783
      %v1794 = vpop.permute.xlu0 %1793
      %1797 = vset.pattern.permute.xlu0 0
      %1798 = vperm.xlu0 %1797, %v1784
      %v1799 = vpop.permute.xlu0 %1798
      %1802 = vset.pattern.permute.xlu0 0
      %1803 = vperm.xlu0 %1802, %v1785
      %v1804 = vpop.permute.xlu0 %1803
      %v1806 = vmul.f32 %v1773, %v1789
      %v1807 = vmul.f32 %v1774, %v1789
      %v1808 = vmul.f32 %v1775, %v1794
      %v1809 = vmul.f32 %v1776, %v1794
      %v1810 = vmul.f32 %v1777, %v1799
      %v1811 = vmul.f32 %v1778, %v1799
      %v1812 = vmul.f32 %v1779, %v1804
      %v1813 = vmul.f32 %v1780, %v1804
      %v1814 = vadd.f32 %v1729, %v1806
      %v1815 = vadd.f32 %v1730, %v1807
      %v1816 = vadd.f32 %v1731, %v1808
      %v1817 = vadd.f32 %v1732, %v1809
      %v1818 = vadd.f32 %v1733, %v1810
      %v1819 = vadd.f32 %v1734, %v1811
      %v1820 = vadd.f32 %v1735, %v1812
      %v1821 = vadd.f32 %v1736, %v1813
      %1822 = vrot.lane.b32.xlu0 %v1256, 112
      %v1823 = vpop.permute.xlu0 %1822
      %1824 = vrot.lane.b32.xlu0 %v1257, 112
      %v1825 = vpop.permute.xlu0 %1824
      %1826 = vrot.lane.b32.xlu0 %v1258, 112
      %v1827 = vpop.permute.xlu0 %1826
      %1828 = vrot.lane.b32.xlu0 %v1259, 112
      %v1829 = vpop.permute.xlu0 %1828
      %1830 = vrot.lane.b32.xlu0 %v1260, 112
      %v1831 = vpop.permute.xlu0 %1830
      %1832 = vrot.lane.b32.xlu0 %v1261, 112
      %v1833 = vpop.permute.xlu0 %1832
      %1834 = vrot.lane.b32.xlu0 %v1262, 112
      %v1835 = vpop.permute.xlu0 %1834
      %1836 = vrot.lane.b32.xlu0 %v1263, 112
      %v1837 = vpop.permute.xlu0 %1836
      %v1838 = vsel %vm972, %v1823, %v1825
      %v1839 = vsel %vm972, %v1827, %v1829
      %v1840 = vsel %vm972, %v1831, %v1833
      %v1841 = vsel %vm972, %v1835, %v1837
      %v1854 = vsel %vm972, %v1825, %v1823
      %v1855 = vsel %vm972, %v1829, %v1827
      %v1856 = vsel %vm972, %v1833, %v1831
      %v1857 = vsel %vm972, %v1837, %v1835
      %v1858 = vmul.f32 %v1838, %v999
      %v1859 = vmul.f32 %v1854, %v1003
      %v1860 = vmul.f32 %v1839, %v999
      %v1861 = vmul.f32 %v1855, %v1003
      %v1862 = vmul.f32 %v1840, %v999
      %v1863 = vmul.f32 %v1856, %v1003
      %v1864 = vmul.f32 %v1841, %v999
      %v1865 = vmul.f32 %v1857, %v1003
      %s1866 = scalar_lea.vmem %s5, 224
      %v1867 = vld [vmem:[%s1866] sm:$0xff]
      %v1868 = vld [vmem:[%s1866 + $0x8] sm:$0xff]
      %v1869 = vld [vmem:[%s1866 + $0x10] sm:$0xff]
      %v1870 = vld [vmem:[%s1866 + $0x18] sm:$0xff]
      %1872 = vset.pattern.permute.xlu0 0
      %1873 = vperm.xlu0 %1872, %v1867
      %v1874 = vpop.permute.xlu0 %1873
      %1877 = vset.pattern.permute.xlu0 0
      %1878 = vperm.xlu0 %1877, %v1868
      %v1879 = vpop.permute.xlu0 %1878
      %1882 = vset.pattern.permute.xlu0 0
      %1883 = vperm.xlu0 %1882, %v1869
      %v1884 = vpop.permute.xlu0 %1883
      %1887 = vset.pattern.permute.xlu0 0
      %1888 = vperm.xlu0 %1887, %v1870
      %v1889 = vpop.permute.xlu0 %1888
      %v1891 = vmul.f32 %v1858, %v1874
      %v1892 = vmul.f32 %v1859, %v1874
      %v1893 = vmul.f32 %v1860, %v1879
      %v1894 = vmul.f32 %v1861, %v1879
      %v1895 = vmul.f32 %v1862, %v1884
      %v1896 = vmul.f32 %v1863, %v1884
      %v1897 = vmul.f32 %v1864, %v1889
      %v1898 = vmul.f32 %v1865, %v1889
      %v1899 = vadd.f32 %v1814, %v1891
      %v1900 = vadd.f32 %v1815, %v1892
      %v1901 = vadd.f32 %v1816, %v1893
      %v1902 = vadd.f32 %v1817, %v1894
      %v1903 = vadd.f32 %v1818, %v1895
      %v1904 = vadd.f32 %v1819, %v1896
      %v1905 = vadd.f32 %v1820, %v1897
      %v1906 = vadd.f32 %v1821, %v1898
      %1907 = vrot.lane.b32.xlu0 %v1256, 111
      %v1908 = vpop.permute.xlu0 %1907
      %1909 = vrot.lane.b32.xlu0 %v1257, 111
      %v1910 = vpop.permute.xlu0 %1909
      %1911 = vrot.lane.b32.xlu0 %v1258, 111
      %v1912 = vpop.permute.xlu0 %1911
      %1913 = vrot.lane.b32.xlu0 %v1259, 111
      %v1914 = vpop.permute.xlu0 %1913
      %1915 = vrot.lane.b32.xlu0 %v1260, 111
      %v1916 = vpop.permute.xlu0 %1915
      %1917 = vrot.lane.b32.xlu0 %v1261, 111
      %v1918 = vpop.permute.xlu0 %1917
      %1919 = vrot.lane.b32.xlu0 %v1262, 111
      %v1920 = vpop.permute.xlu0 %1919
      %1921 = vrot.lane.b32.xlu0 %v1263, 111
      %v1922 = vpop.permute.xlu0 %1921
      %v1923 = vsel %vm1071, %v1908, %v1910
      %v1924 = vsel %vm1071, %v1912, %v1914
      %v1925 = vsel %vm1071, %v1916, %v1918
      %v1926 = vsel %vm1071, %v1920, %v1922
      %v1939 = vsel %vm1071, %v1910, %v1908
      %v1940 = vsel %vm1071, %v1914, %v1912
      %v1941 = vsel %vm1071, %v1918, %v1916
      %v1942 = vsel %vm1071, %v1922, %v1920
      %v1943 = vmul.f32 %v1923, %v1098
      %v1944 = vmul.f32 %v1939, %v1102
      %v1945 = vmul.f32 %v1924, %v1098
      %v1946 = vmul.f32 %v1940, %v1102
      %v1947 = vmul.f32 %v1925, %v1098
      %v1948 = vmul.f32 %v1941, %v1102
      %v1949 = vmul.f32 %v1926, %v1098
      %v1950 = vmul.f32 %v1942, %v1102
      %s1951 = scalar_lea.vmem %s5, 256
      %v1952 = vld [vmem:[%s1951] sm:$0xff]
      %v1953 = vld [vmem:[%s1951 + $0x8] sm:$0xff]
      %v1954 = vld [vmem:[%s1951 + $0x10] sm:$0xff]
      %v1955 = vld [vmem:[%s1951 + $0x18] sm:$0xff]
      %1957 = vset.pattern.permute.xlu0 0
      %1958 = vperm.xlu0 %1957, %v1952
      %v1959 = vpop.permute.xlu0 %1958
      %1962 = vset.pattern.permute.xlu0 0
      %1963 = vperm.xlu0 %1962, %v1953
      %v1964 = vpop.permute.xlu0 %1963
      %1967 = vset.pattern.permute.xlu0 0
      %1968 = vperm.xlu0 %1967, %v1954
      %v1969 = vpop.permute.xlu0 %1968
      %1972 = vset.pattern.permute.xlu0 0
      %1973 = vperm.xlu0 %1972, %v1955
      %v1974 = vpop.permute.xlu0 %1973
      %v1976 = vmul.f32 %v1943, %v1959
      %v1977 = vmul.f32 %v1944, %v1959
      %v1978 = vmul.f32 %v1945, %v1964
      %v1979 = vmul.f32 %v1946, %v1964
      %v1980 = vmul.f32 %v1947, %v1969
      %v1981 = vmul.f32 %v1948, %v1969
      %v1982 = vmul.f32 %v1949, %v1974
      %v1983 = vmul.f32 %v1950, %v1974
      %v1984 = vadd.f32 %v1899, %v1976
      %v1985 = vadd.f32 %v1900, %v1977
      %v1986 = vadd.f32 %v1901, %v1978
      %v1987 = vadd.f32 %v1902, %v1979
      %v1988 = vadd.f32 %v1903, %v1980
      %v1989 = vadd.f32 %v1904, %v1981
      %v1990 = vadd.f32 %v1905, %v1982
      %v1991 = vadd.f32 %v1906, %v1983
      %v1992 = vld [vmem:[%s6] sm:$0xf]
      %v1993 = vld [vmem:[%s6 + $0x4] sm:$0xf]
      %v1994 = vld [vmem:[%s6 + $0x8] sm:$0xf]
      %v1995 = vld [vmem:[%s6 + $0xc] sm:$0xf]
      %v1996 = vpack.c.bf16 %v1986, %v1984
      %v1997 = vpack.c.bf16 %v1987, %v1985
      %v1998 = vpack.c.bf16 %v1990, %v1988
      %v1999 = vpack.c.bf16 %v1991, %v1989
      %v2000 = vld [vmem:[%s7] sm:$0xff]
      %v2001 = vld [vmem:[%s7 + $0x8] sm:$0xff]
      %v2002 = vld [vmem:[%s7 + $0x10] sm:$0xff]
      %v2003 = vld [vmem:[%s7 + $0x18] sm:$0xff]
      %2005 = vset.pattern.permute.xlu0 0
      %2006 = vperm.xlu0 %2005, %v2000
      %v2007 = vpop.permute.xlu0 %2006
      %2010 = vset.pattern.permute.xlu0 0
      %2011 = vperm.xlu0 %2010, %v2001
      %v2012 = vpop.permute.xlu0 %2011
      %2015 = vset.pattern.permute.xlu0 0
      %2016 = vperm.xlu0 %2015, %v2002
      %v2017 = vpop.permute.xlu0 %2016
      %2020 = vset.pattern.permute.xlu0 0
      %2021 = vperm.xlu0 %2020, %v2003
      %v2022 = vpop.permute.xlu0 %2021
      %v2028 = vunpack.c.l.b16 %v1992
      %v2029 = vunpack.c.l.b16 %v1993
      %v2030 = vunpack.c.l.b16 %v1994
      %v2031 = vunpack.c.l.b16 %v1995
      %v2032 = vpack.c.b16 %v2029, %v2028
      %v2033 = vpack.c.b16 %v2031, %v2030
      %v2035 = vsel %vm1196, %v2032, 0
      %v2038 = vsel %vm1196, %v2033, 0
      %2040 = vmatprep.subr.bf16.mxu0 %v1997
      %2041 = vmatpush1.bf16.msra.mxu0 %v1996
      %2042 = vmatprep.subr.bf16.mxu0 %v1999
      %2043 = vmatpush1.bf16.msra.mxu0 %v1998
      %2044 = vmatprep.subr.bf16.mxu0 0
      %2045 = vmatpush1.bf16.msra.mxu0 0
      %2046 = vmatprep.subr.bf16.mxu0 0
      %2047 = vmatpush1.bf16.msra.mxu0 0
      %2048 = vmatprep.subr.bf16.mxu0 0
      %2049 = vmatpush1.bf16.msra.mxu0 0
      %2050 = vmatprep.subr.bf16.mxu0 0
      %2051 = vmatpush1.bf16.msra.mxu0 0
      %2052 = vmatprep.subr.bf16.mxu0 0
      %2053 = vmatpush1.bf16.msra.mxu0 0
      %2054 = vmatprep.subr.bf16.mxu0 0
      %2055 = vmatpush1.bf16.msra.mxu0 0
      %2056 = vmatprep.subr.bf16.mxu0 0
      %2057 = vmatpush1.bf16.msra.mxu0 0
      %2058 = vmatprep.subr.bf16.mxu0 0
      %2059 = vmatpush1.bf16.msra.mxu0 0
      %2060 = vmatprep.subr.bf16.mxu0 0
      %2061 = vmatpush1.bf16.msra.mxu0 0
      %2062 = vmatprep.subr.bf16.mxu0 0
      %2063 = vmatpush1.bf16.msra.mxu0 0
      %2064 = vmatprep.subr.bf16.mxu0 0
      %2065 = vmatpush1.bf16.msra.mxu0 0
      %2066 = vmatprep.subr.bf16.mxu0 0
      %2067 = vmatpush1.bf16.msra.mxu0 0
      %2068 = vmatprep.subr.bf16.mxu0 0
      %2069 = vmatpush1.bf16.msra.mxu0 0
      %2070 = vmatprep.subr.bf16.mxu0 0
      %2071 = vmatpush1.bf16.msra.mxu0 0
      %2072 = vmatprep.mubr.bf16.mxu0 0
      %2073 = vmatmul.mubr.bf16.gmra.mrb[0].mxu0 %v2035
      %v2074 = vpop.f32.mrb[0].mxu0
      %v2075 = vadd.f32 %v2007, %v2074
      %v2076 = vpop.f32.mrb[0].mxu0
      %v2077 = vadd.f32 %v2007, %v2076
      %v2078 = vpop.f32.mrb[0].mxu0
      %v2079 = vadd.f32 %v2012, %v2078
      %v2080 = vpop.f32.mrb[0].mxu0
      %v2081 = vadd.f32 %v2012, %v2080
      %2082 = vmatprep.mubr.bf16.mxu0 0
      %2083 = vmatmul.mubr.bf16.gmra.mrb[0].mxu0 %v2038
      %v2084 = vpop.f32.mrb[0].mxu0
      %v2085 = vadd.f32 %v2017, %v2084
      %v2086 = vpop.f32.mrb[0].mxu0
      %v2087 = vadd.f32 %v2017, %v2086
      %v2088 = vpop.f32.mrb[0].mxu0
      %v2089 = vadd.f32 %v2022, %v2088
      %v2090 = vpop.f32.mrb[0].mxu0
      %v2091 = vadd.f32 %v2022, %v2090
      %2092 = vdwg.mxu0
      %v2093 = vadd.f32 %v2075, %v307
      %v2094 = vadd.f32 %v2077, %v308
      %v2095 = vadd.f32 %v2079, %v309
      %v2096 = vadd.f32 %v2081, %v310
      %v2097 = vadd.f32 %v2085, %v311
      %v2098 = vadd.f32 %v2087, %v312
      %v2099 = vadd.f32 %v2089, %v313
      %v2100 = vadd.f32 %v2091, %v314
      %v2101 = vmax.f32 %v2093, 0.0
      %v2102 = vmax.f32 %v2094, 0.0
      %v2103 = vmax.f32 %v2095, 0.0
      %v2104 = vmax.f32 %v2096, 0.0
      %v2105 = vmax.f32 %v2097, 0.0
      %v2106 = vmax.f32 %v2098, 0.0
      %v2107 = vmax.f32 %v2099, 0.0
      %v2108 = vmax.f32 %v2100, 0.0
      %2109 = vst [vmem:[%s305] sm:$0xff] %v2101
      %2110 = vst [vmem:[%s305 + $0x8] sm:$0xff] %v2102
      %2111 = vst [vmem:[%s305 + $0x10] sm:$0xff] %v2103
      %2112 = vst [vmem:[%s305 + $0x18] sm:$0xff] %v2104
      %2113 = vst [vmem:[%s305 + $0x20] sm:$0xff] %v2105
      %2114 = vst [vmem:[%s305 + $0x28] sm:$0xff] %v2106
      %2115 = vst [vmem:[%s305 + $0x30] sm:$0xff] %v2107
      %2116 = vst [vmem:[%s305 + $0x38] sm:$0xff] %v2108
      %p2117 = scmp.lt.s32.totalorder %s19, 1
      %s2118 = scalar_select %p2117, %s19, 1
      %s2119 = smul.addr %s2118, 8
      %s2120 = smul.addr %s2119, 8
      %s2121 = scalar_lea.vmem %s8, %s2120
      // Predicated region
      $region53: #{ds_block_pallas.1} parent=51 // pred_check
        %p2122 = pneg %p210
      $region54: #{ds_block_pallas.1} parent=51 // pred_check_branch
        %2124 = sbr.rel (%p2122) target = $region56
      $region55: #{ds_block_pallas.1} parent=51 // pred_region
        _
      $region56: #{ds_block_pallas.1} parent=51 // pred_fallthru
        _
    $region52: #{ds_block_pallas.1} parent=5 // pred_fallthru
      _
    %p2125 = scmp.le.s32.totalorder 2, %s14
    // Predicated region
    $region57: #{ds_block_pallas.1} parent=5 // pred_check
      %p2126 = pneg %p2125
    $region58: #{ds_block_pallas.1} parent=5 // pred_check_branch
      %2128 = sbr.rel (%p2126) target = $region60
    $region59: #{ds_block_pallas.1} parent=5 // pred_region
      %s2129 = ssub.s32 %s14, 2
      // Predicated region
      $region61: #{ds_block_pallas.1} parent=59 // pred_check
        %p2130 = pneg %p216
      $region62: #{ds_block_pallas.1} parent=59 // pred_check_branch
        %2132 = sbr.rel (%p2130) target = $region64
      $region63: #{ds_block_pallas.1} parent=59 // pred_region
        %p2133 = scmp.lt.s32.totalorder %s20, 1
        %s2134 = scalar_select %p2133, %s20, 1
        %s2135 = smul.addr %s2134, 8
        %s2136 = smul.addr %s2135, 8
        %s2137 = scalar_lea.vmem %s8, %s2136
      $region64: #{ds_block_pallas.1} parent=59 // pred_fallthru
        _
    $region60: #{ds_block_pallas.1} parent=5 // pred_fallthru
      _
  $region6: #{ds_block_pallas.1} parent=0 // loop_footer
    %s18 = sadd.s32 1, %s14
  $region7: #{ds_block_pallas.1} parent=0 // loop_footer_branch
    %13 = sbr.rel target = $region3
  $region8: #{ds_block_pallas.1} parent=0 // loop_exit
    _

</llo_original>
